<compile_context>
chip_gen: v6e
topology: v6e:2x2x1
jax: 0.10.0
libtpu: 0.0.40
codegen_flags: <defaults>
</compile_context>

<pallas_src>
import functools
import math

import jax
import jax.numpy as jnp
from jax.experimental import pallas as pl
from jax.experimental.pallas import tpu as pltpu


# ----------------------------------------------------------------------------
# Kernel 1: tiled linear projection  out = x @ W^T + b   (W torch-style [out, in])
# ----------------------------------------------------------------------------
def _linear_kernel(x_ref, w_ref, b_ref, o_ref, acc_ref):
    k = pl.program_id(2)
    nk = pl.num_programs(2)

    @pl.when(k == 0)
    def _():
        acc_ref[...] = jnp.zeros_like(acc_ref)

    # x: (tm, tk), w: (tn, tk) -> contract the last dim of both (no W transpose).
    acc_ref[...] += jax.lax.dot_general(
        x_ref[...], w_ref[...], (((1,), (1,)), ((), ())),
        preferred_element_type=jnp.float32,
    )

    @pl.when(k == nk - 1)
    def _():
        o_ref[...] = (acc_ref[...] + b_ref[...]).astype(o_ref.dtype)


def _pick_tile(dim, candidates):
    for c in candidates:
        if dim % c == 0:
            return c
    return dim  # small / odd dims: use full extent (valid per BlockSpec rules)


def linear_pallas(x, w, b):
    """x: (M, Hin) f32, w: (Hout, Hin) torch layout, b: (Hout,) -> (M, Hout) f32."""
    M, Hin = x.shape
    Hout = w.shape[0]
    tm = _pick_tile(M, (256, 128))
    tn = _pick_tile(Hout, (256, 128))
    # 256-deep contraction feeds the v6e/v7x 2x256^2 MXU; 128 already saturates v5e.
    tk = _pick_tile(Hin, (256, 128))
    grid = (M // tm, Hout // tn, Hin // tk)
    return pl.pallas_call(
        _linear_kernel,
        out_shape=jax.ShapeDtypeStruct((M, Hout), jnp.float32),
        grid=grid,
        in_specs=[
            pl.BlockSpec((tm, tk), lambda i, j, k: (i, k)),
            pl.BlockSpec((tn, tk), lambda i, j, k: (j, k)),
            pl.BlockSpec((1, tn), lambda i, j, k: (0, j)),
        ],
        out_specs=pl.BlockSpec((tm, tn), lambda i, j, k: (i, j)),
        scratch_shapes=[pltpu.VMEM((tm, tn), jnp.float32)],
        compiler_params=pltpu.CompilerParams(
            dimension_semantics=("parallel", "parallel", "arbitrary")
        ),
    )(x, w, b.reshape(1, Hout))


# ----------------------------------------------------------------------------
# Kernel 2: per-batch multi-head attention (all heads in one grid step).
#   q:  (1, S, H)   lane-dense, heads are contiguous D-wide slices of the last dim
#   kv: (1, T, 2H)  [k | v] from the fused projection
#   scores out: (1, nH, S, T)  masked, pre-softmax (module output)
#   ctx out:    (1, S, H)      lane-dense, heads concatenated on the last dim
# ----------------------------------------------------------------------------
def _attn_kernel(*refs, scale, num_heads, head_dim, hidden, add_residual):
    if add_residual:
        q_ref, kv_ref, mask_ref, res_ref, scores_ref, out_ref = refs
    else:
        q_ref, kv_ref, mask_ref, scores_ref, out_ref = refs
        res_ref = None

    m = mask_ref[0]  # (1, T) float32, loaded once per batch

    for h in range(num_heads):          # static unroll over heads
        lo = h * head_dim
        q_h = q_ref[0, :, lo:lo + head_dim]                       # (S, D)
        k_h = kv_ref[0, :, lo:lo + head_dim]                      # (T, D)
        v_h = kv_ref[0, :, hidden + lo:hidden + lo + head_dim]    # (T, D)

        # q @ k^T without an explicit transpose
        s = jax.lax.dot_general(
            q_h, k_h, (((1,), (1,)), ((), ())),
            preferred_element_type=jnp.float32,
        ) * scale                                                 # (S, T)

        masked = jnp.where(m == 0.0, -jnp.inf, s)                 # broadcast (1,T)
        scores_ref[0, h] = masked

        mx = jnp.max(masked, axis=-1, keepdims=True)
        e = jnp.exp(masked - mx)
        inv = pl.reciprocal(jnp.sum(e, axis=-1, keepdims=True), approx=True)
        p = e * inv

        ctx_h = jnp.dot(p, v_h, preferred_element_type=jnp.float32)  # (S, D)
        if add_residual:
            ctx_h = ctx_h + res_ref[0, :, lo:lo + head_dim]
        out_ref[0, :, lo:lo + head_dim] = ctx_h


def attention_pallas(q, kv, mask, residual, scale, num_heads, add_residual):
    """q: (B,S,H), kv: (B,T,2H), mask: (B,1,T) f32, residual: (B,S,H) or None."""
    B, S, H = q.shape
    T = kv.shape[1]
    D = H // num_heads
    kernel = functools.partial(
        _attn_kernel, scale=scale, num_heads=num_heads, head_dim=D,
        hidden=H, add_residual=add_residual,
    )
    in_specs = [
        pl.BlockSpec((1, S, H), lambda b: (b, 0, 0)),
        pl.BlockSpec((1, T, 2 * H), lambda b: (b, 0, 0)),
        pl.BlockSpec((1, 1, T), lambda b: (b, 0, 0)),
    ]
    inputs = [q, kv, mask]
    if add_residual:
        in_specs.append(pl.BlockSpec((1, S, H), lambda b: (b, 0, 0)))
        inputs.append(residual)

    scores, out = pl.pallas_call(
        kernel,
        out_shape=(
            jax.ShapeDtypeStruct((B, num_heads, S, T), jnp.float32),
            jax.ShapeDtypeStruct((B, S, H), jnp.float32),
        ),
        grid=(B,),
        in_specs=in_specs,
        out_specs=(
            pl.BlockSpec((1, num_heads, S, T), lambda b: (b, 0, 0, 0)),
            pl.BlockSpec((1, S, H), lambda b: (b, 0, 0)),
        ),
        compiler_params=pltpu.CompilerParams(dimension_semantics=("parallel",)),
    )(*inputs)
    return scores, out


# ----------------------------------------------------------------------------
# Module forward
# ----------------------------------------------------------------------------
def cross_attention_selector(
    hidden_states, encoder_hidden_states, encoder_attention_mask,
    params, num_heads, output_layer=False,
):
    B, S, H = hidden_states.shape
    T = encoder_hidden_states.shape[1]
    D = H // num_heads
    scale = 1.0 / math.sqrt(D)

    # Q projection
    q = linear_pallas(
        hidden_states.reshape(B * S, H), params["wq"], params["bq"]
    ).reshape(B, S, H)

    # Fused K+V projection: one pass over encoder_hidden_states, (2H)-wide output.
    wkv = jnp.concatenate([params["wk"], params["wv"]], axis=0)   # (2H, H)
    bkv = jnp.concatenate([params["bk"], params["bv"]], axis=0)   # (2H,)
    kv = linear_pallas(
        encoder_hidden_states.reshape(B * T, H), wkv, bkv
    ).reshape(B, T, 2 * H)

    mask3 = encoder_attention_mask.astype(jnp.float32).reshape(B, 1, T)
    scores, attention_output = attention_pallas(
        q, kv, mask3, hidden_states, scale, num_heads, add_residual=output_layer
    )
    return attention_output, scores


# ----------------------------------------------------------------------------
# Pure-JAX reference for verification
# ----------------------------------------------------------------------------
def reference(hidden_states, encoder_hidden_states, mask, params, num_heads):
    B, S, H = hidden_states.shape
    T = encoder_hidden_states.shape[1]
    D = H // num_heads

    def shape_heads(x, L):
        return x.reshape(B, L, num_heads, D).transpose(0, 2, 1, 3)

    q = shape_heads(hidden_states @ params["wq"].T + params["bq"], S)
    k = shape_heads(encoder_hidden_states @ params["wk"].T + params["bk"], T)
    v = shape_heads(encoder_hidden_states @ params["wv"].T + params["bv"], T)
    s = jnp.einsum("bhsd,bhtd->bhst", q, k) / math.sqrt(D)
    s = jnp.where(mask[:, None, None, :] == 0, -jnp.inf, s)
    p = jax.nn.softmax(s, axis=-1)
    ctx = jnp.einsum("bhst,bhtd->bhsd", p, v)
    out = ctx.transpose(0, 2, 1, 3).reshape(B, S, H)
    return out, s


if __name__ == "__main__":
    B, S, T, H, NH = 2, 8, 8, 32, 4

    key = jax.random.PRNGKey(0)
    ks = jax.random.split(key, 8)
    init = lambda k, shape, sc=0.1: (sc * jax.random.normal(k, shape)).astype(jnp.float32)

    params = {
        "wq": init(ks[0], (H, H)), "bq": init(ks[1], (H,)),
        "wk": init(ks[2], (H, H)), "bk": init(ks[3], (H,)),
        "wv": init(ks[4], (H, H)), "bv": init(ks[5], (H,)),
    }
    hidden_states = init(ks[6], (B, S, H), 1.0)
    encoder_hidden_states = init(ks[7], (B, T, H), 1.0)
    # encoder mask: batch 0 fully valid, batch 1 has the last 2 positions masked out
    valid_lens = jnp.array([T, T - 2])
    encoder_attention_mask = (
        jnp.arange(T)[None, :] < valid_lens[:, None]
    ).astype(jnp.float32)

    fwd = jax.jit(cross_attention_selector, static_argnums=(4, 5))

    out, scores = fwd(hidden_states, encoder_hidden_states, encoder_attention_mask,
                      params, NH, False)
    out = jax.block_until_ready(out)
    scores = jax.block_until_ready(scores)

    ref_out, ref_scores = reference(
        hidden_states, encoder_hidden_states, encoder_attention_mask, params, NH
    )
    assert out.shape == (B, S, H) and scores.shape == (B, NH, S, T)
    # scores are unaffected by the approximate reciprocal -> tight tolerance
    assert jnp.allclose(scores, ref_scores, atol=1e-5, rtol=1e-5)
    # context uses pl.reciprocal(approx=True) in the softmax -> slightly relaxed
    assert jnp.allclose(out, ref_out, atol=5e-3, rtol=5e-3)

    # fused-residual path (output_layer=True)
    out_res, scores_res = fwd(hidden_states, encoder_hidden_states,
                              encoder_attention_mask, params, NH, True)
    out_res = jax.block_until_ready(out_res)
    assert jnp.allclose(out_res, ref_out + hidden_states, atol=5e-3, rtol=5e-3)
    assert jnp.allclose(scores_res, ref_scores, atol=1e-5, rtol=1e-5)

    print("KERNEL_OK")
</pallas_src>

<mosaic_0001>
module attributes {stable_mosaic.version = 11 : i64} {
  func.func @_linear_kernel(%arg0: i32, %arg1: i32, %arg2: i32, %arg3: memref<16x32xf32, #tpu.memory_space<vmem>>, %arg4: memref<32x32xf32, #tpu.memory_space<vmem>>, %arg5: memref<1x32xf32, #tpu.memory_space<vmem>>, %arg6: memref<16x32xf32, #tpu.memory_space<vmem>>, %arg7: memref<16x32xf32, #tpu.memory_space<vmem>>) attributes {dimension_semantics = [#tpu.dimension_semantics<parallel>, #tpu.dimension_semantics<parallel>, #tpu.dimension_semantics<arbitrary>], iteration_bounds = array<i64: 1, 1, 1>, scalar_prefetch = 0 : i64, scratch_operands = 1 : i64, tpu.core_type = #tpu.core_type<tc>, window_params = [{transform_indices = @transform_0, window_bounds = array<i64: 16, 32>}, {transform_indices = @transform_1, window_bounds = array<i64: 32, 32>}, {transform_indices = @transform_2, window_bounds = array<i64: 1, 32>}, {transform_indices = @transform_3, window_bounds = array<i64: 16, 32>}]} {
    %c0_i32 = arith.constant 0 : i32
    %0 = arith.cmpi eq, %arg2, %c0_i32 : i32
    %1 = arith.extui %0 : i1 to i32
    %c0_i32_0 = arith.constant 0 : i32
    %2 = arith.cmpi ne, %1, %c0_i32_0 : i32
    scf.if %2 {
      %cst_10 = arith.constant 0.000000e+00 : f32
      %12 = vector.broadcast %cst_10 : f32 to vector<16x32xf32>
      %c0_11 = arith.constant 0 : index
      %c0_12 = arith.constant 0 : index
      %13 = vector.load %arg7[%c0_11, %c0_12] : memref<16x32xf32, #tpu.memory_space<vmem>>, vector<16x32xf32>
      tpu.vector_store %arg7[%c0_11, %c0_12], %12 {strides = array<i32>} : memref<16x32xf32, #tpu.memory_space<vmem>>, vector<16x32xf32>,
    } else {
    }
    %c0 = arith.constant 0 : index
    %c0_1 = arith.constant 0 : index
    %3 = vector.load %arg7[%c0, %c0_1] : memref<16x32xf32, #tpu.memory_space<vmem>>, vector<16x32xf32>
    %c0_2 = arith.constant 0 : index
    %c0_3 = arith.constant 0 : index
    %4 = vector.load %arg3[%c0_2, %c0_3] : memref<16x32xf32, #tpu.memory_space<vmem>>, vector<16x32xf32>
    %c0_4 = arith.constant 0 : index
    %c0_5 = arith.constant 0 : index
    %5 = vector.load %arg4[%c0_4, %c0_5] : memref<32x32xf32, #tpu.memory_space<vmem>>, vector<32x32xf32>
    %cst = arith.constant dense<0.000000e+00> : vector<16x32xf32>
    %6 = tpu.matmul %4, %5, %cst {dimension_numbers = #tpu.dot_dimension_numbers<[1], [1], [0], [0], [0, 0, 1, 0], [], []>} : vector<16x32xf32>, vector<32x32xf32>, vector<16x32xf32> -> vector<16x32xf32>
    %7 = arith.addf %3, %6 : vector<16x32xf32>
    %c0_6 = arith.constant 0 : index
    %c0_7 = arith.constant 0 : index
    %8 = vector.load %arg7[%c0_6, %c0_7] : memref<16x32xf32, #tpu.memory_space<vmem>>, vector<16x32xf32>
    tpu.vector_store %arg7[%c0_6, %c0_7], %7 {strides = array<i32>} : memref<16x32xf32, #tpu.memory_space<vmem>>, vector<16x32xf32>,
    %c0_i32_8 = arith.constant 0 : i32
    %9 = arith.cmpi eq, %arg2, %c0_i32_8 : i32
    %10 = arith.extui %9 : i1 to i32
    %c0_i32_9 = arith.constant 0 : i32
    %11 = arith.cmpi ne, %10, %c0_i32_9 : i32
    scf.if %11 {
      %c0_10 = arith.constant 0 : index
      %c0_11 = arith.constant 0 : index
      %12 = vector.load %arg7[%c0_10, %c0_11] : memref<16x32xf32, #tpu.memory_space<vmem>>, vector<16x32xf32>
      %c0_12 = arith.constant 0 : index
      %c0_13 = arith.constant 0 : index
      %13 = vector.load %arg5[%c0_12, %c0_13] : memref<1x32xf32, #tpu.memory_space<vmem>>, vector<1x32xf32>
      %14 = vector.broadcast %13 : vector<1x32xf32> to vector<16x32xf32>
      %15 = arith.addf %12, %14 : vector<16x32xf32>
      %c0_14 = arith.constant 0 : index
      %c0_15 = arith.constant 0 : index
      %16 = vector.load %arg6[%c0_14, %c0_15] : memref<16x32xf32, #tpu.memory_space<vmem>>, vector<16x32xf32>
      tpu.vector_store %arg6[%c0_14, %c0_15], %15 {strides = array<i32>} : memref<16x32xf32, #tpu.memory_space<vmem>>, vector<16x32xf32>,
    } else {
    }
    return
  }
  func.func @transform_0(%arg0: i32, %arg1: i32, %arg2: i32) -> (i32, i32) {
    %c0_i32 = arith.constant 0 : i32
    return %arg0, %arg2 : i32, i32
  }
  func.func @transform_1(%arg0: i32, %arg1: i32, %arg2: i32) -> (i32, i32) {
    %c0_i32 = arith.constant 0 : i32
    return %arg1, %arg2 : i32, i32
  }
  func.func @transform_2(%arg0: i32, %arg1: i32, %arg2: i32) -> (i32, i32) {
    %c0_i32 = arith.constant 0 : i32
    %c0_i32_0 = arith.constant 0 : i32
    return %c0_i32, %arg1 : i32, i32
  }
  func.func @transform_3(%arg0: i32, %arg1: i32, %arg2: i32) -> (i32, i32) {
    %c0_i32 = arith.constant 0 : i32
    return %arg0, %arg1 : i32, i32
  }
}

module attributes {stable_mosaic.version = 11 : i64} {
  func.func @_linear_kernel(%arg0: i32, %arg1: i32, %arg2: i32, %arg3: memref<16x32xf32, #tpu.memory_space<vmem>>, %arg4: memref<64x32xf32, #tpu.memory_space<vmem>>, %arg5: memref<1x64xf32, #tpu.memory_space<vmem>>, %arg6: memref<16x64xf32, #tpu.memory_space<vmem>>, %arg7: memref<16x64xf32, #tpu.memory_space<vmem>>) attributes {dimension_semantics = [#tpu.dimension_semantics<parallel>, #tpu.dimension_semantics<parallel>, #tpu.dimension_semantics<arbitrary>], iteration_bounds = array<i64: 1, 1, 1>, scalar_prefetch = 0 : i64, scratch_operands = 1 : i64, tpu.core_type = #tpu.core_type<tc>, window_params = [{transform_indices = @transform_0, window_bounds = array<i64: 16, 32>}, {transform_indices = @transform_1, window_bounds = array<i64: 64, 32>}, {transform_indices = @transform_2, window_bounds = array<i64: 1, 64>}, {transform_indices = @transform_3, window_bounds = array<i64: 16, 64>}]} {
    %c0_i32 = arith.constant 0 : i32
    %0 = arith.cmpi eq, %arg2, %c0_i32 : i32
    %1 = arith.extui %0 : i1 to i32
    %c0_i32_0 = arith.constant 0 : i32
    %2 = arith.cmpi ne, %1, %c0_i32_0 : i32
    scf.if %2 {
      %cst_10 = arith.constant 0.000000e+00 : f32
      %12 = vector.broadcast %cst_10 : f32 to vector<16x64xf32>
      %c0_11 = arith.constant 0 : index
      %c0_12 = arith.constant 0 : index
      %13 = vector.load %arg7[%c0_11, %c0_12] : memref<16x64xf32, #tpu.memory_space<vmem>>, vector<16x64xf32>
      tpu.vector_store %arg7[%c0_11, %c0_12], %12 {strides = array<i32>} : memref<16x64xf32, #tpu.memory_space<vmem>>, vector<16x64xf32>,
    } else {
    }
    %c0 = arith.constant 0 : index
    %c0_1 = arith.constant 0 : index
    %3 = vector.load %arg7[%c0, %c0_1] : memref<16x64xf32, #tpu.memory_space<vmem>>, vector<16x64xf32>
    %c0_2 = arith.constant 0 : index
    %c0_3 = arith.constant 0 : index
    %4 = vector.load %arg3[%c0_2, %c0_3] : memref<16x32xf32, #tpu.memory_space<vmem>>, vector<16x32xf32>
    %c0_4 = arith.constant 0 : index
    %c0_5 = arith.constant 0 : index
    %5 = vector.load %arg4[%c0_4, %c0_5] : memref<64x32xf32, #tpu.memory_space<vmem>>, vector<64x32xf32>
    %cst = arith.constant dense<0.000000e+00> : vector<16x64xf32>
    %6 = tpu.matmul %4, %5, %cst {dimension_numbers = #tpu.dot_dimension_numbers<[1], [1], [0], [0], [0, 0, 1, 0], [], []>} : vector<16x32xf32>, vector<64x32xf32>, vector<16x64xf32> -> vector<16x64xf32>
    %7 = arith.addf %3, %6 : vector<16x64xf32>
    %c0_6 = arith.constant 0 : index
    %c0_7 = arith.constant 0 : index
    %8 = vector.load %arg7[%c0_6, %c0_7] : memref<16x64xf32, #tpu.memory_space<vmem>>, vector<16x64xf32>
    tpu.vector_store %arg7[%c0_6, %c0_7], %7 {strides = array<i32>} : memref<16x64xf32, #tpu.memory_space<vmem>>, vector<16x64xf32>,
    %c0_i32_8 = arith.constant 0 : i32
    %9 = arith.cmpi eq, %arg2, %c0_i32_8 : i32
    %10 = arith.extui %9 : i1 to i32
    %c0_i32_9 = arith.constant 0 : i32
    %11 = arith.cmpi ne, %10, %c0_i32_9 : i32
    scf.if %11 {
      %c0_10 = arith.constant 0 : index
      %c0_11 = arith.constant 0 : index
      %12 = vector.load %arg7[%c0_10, %c0_11] : memref<16x64xf32, #tpu.memory_space<vmem>>, vector<16x64xf32>
      %c0_12 = arith.constant 0 : index
      %c0_13 = arith.constant 0 : index
      %13 = vector.load %arg5[%c0_12, %c0_13] : memref<1x64xf32, #tpu.memory_space<vmem>>, vector<1x64xf32>
      %14 = vector.broadcast %13 : vector<1x64xf32> to vector<16x64xf32>
      %15 = arith.addf %12, %14 : vector<16x64xf32>
      %c0_14 = arith.constant 0 : index
      %c0_15 = arith.constant 0 : index
      %16 = vector.load %arg6[%c0_14, %c0_15] : memref<16x64xf32, #tpu.memory_space<vmem>>, vector<16x64xf32>
      tpu.vector_store %arg6[%c0_14, %c0_15], %15 {strides = array<i32>} : memref<16x64xf32, #tpu.memory_space<vmem>>, vector<16x64xf32>,
    } else {
    }
    return
  }
  func.func @transform_0(%arg0: i32, %arg1: i32, %arg2: i32) -> (i32, i32) {
    %c0_i32 = arith.constant 0 : i32
    return %arg0, %arg2 : i32, i32
  }
  func.func @transform_1(%arg0: i32, %arg1: i32, %arg2: i32) -> (i32, i32) {
    %c0_i32 = arith.constant 0 : i32
    return %arg1, %arg2 : i32, i32
  }
  func.func @transform_2(%arg0: i32, %arg1: i32, %arg2: i32) -> (i32, i32) {
    %c0_i32 = arith.constant 0 : i32
    %c0_i32_0 = arith.constant 0 : i32
    return %c0_i32, %arg1 : i32, i32
  }
  func.func @transform_3(%arg0: i32, %arg1: i32, %arg2: i32) -> (i32, i32) {
    %c0_i32 = arith.constant 0 : i32
    return %arg0, %arg1 : i32, i32
  }
}

module attributes {stable_mosaic.version = 11 : i64} {
  func.func @_attn_kernel(%arg0: i32, %arg1: memref<1x8x32xf32, #tpu.memory_space<vmem>>, %arg2: memref<1x8x64xf32, #tpu.memory_space<vmem>>, %arg3: memref<1x1x8xf32, #tpu.memory_space<vmem>>, %arg4: memref<1x4x8x8xf32, #tpu.memory_space<vmem>>, %arg5: memref<1x8x32xf32, #tpu.memory_space<vmem>>) attributes {dimension_semantics = [#tpu.dimension_semantics<parallel>], iteration_bounds = array<i64: 2>, scalar_prefetch = 0 : i64, scratch_operands = 0 : i64, tpu.core_type = #tpu.core_type<tc>, window_params = [{transform_indices = @transform_0, window_bounds = array<i64: 1, 8, 32>}, {transform_indices = @transform_1, window_bounds = array<i64: 1, 8, 64>}, {transform_indices = @transform_2, window_bounds = array<i64: 1, 1, 8>}, {transform_indices = @transform_3, window_bounds = array<i64: 1, 4, 8, 8>}, {transform_indices = @transform_4, window_bounds = array<i64: 1, 8, 32>}]} {
    %c0 = arith.constant 0 : index
    %c0_0 = arith.constant 0 : index
    %c0_1 = arith.constant 0 : index
    %0 = vector.load %arg3[%c0, %c0_0, %c0_1] : memref<1x1x8xf32, #tpu.memory_space<vmem>>, vector<1x1x8xf32>
    %1 = vector.shape_cast %0 : vector<1x1x8xf32> to vector<1x8xf32>
    %c0_2 = arith.constant 0 : index
    %c0_3 = arith.constant 0 : index
    %c0_4 = arith.constant 0 : index
    %2 = vector.load %arg1[%c0_2, %c0_3, %c0_4] : memref<1x8x32xf32, #tpu.memory_space<vmem>>, vector<1x8x8xf32>
    %3 = vector.shape_cast %2 : vector<1x8x8xf32> to vector<8x8xf32>
    %c0_5 = arith.constant 0 : index
    %c0_6 = arith.constant 0 : index
    %c0_7 = arith.constant 0 : index
    %4 = vector.load %arg2[%c0_5, %c0_6, %c0_7] : memref<1x8x64xf32, #tpu.memory_space<vmem>>, vector<1x8x8xf32>
    %5 = vector.shape_cast %4 : vector<1x8x8xf32> to vector<8x8xf32>
    %c0_8 = arith.constant 0 : index
    %c0_9 = arith.constant 0 : index
    %c32 = arith.constant 32 : index
    %6 = vector.load %arg2[%c0_8, %c0_9, %c32] : memref<1x8x64xf32, #tpu.memory_space<vmem>>, vector<1x8x8xf32>
    %7 = vector.shape_cast %6 : vector<1x8x8xf32> to vector<8x8xf32>
    %cst = arith.constant dense<0.000000e+00> : vector<8x8xf32>
    %8 = tpu.matmul %3, %5, %cst {dimension_numbers = #tpu.dot_dimension_numbers<[1], [1], [0], [0], [0, 0, 1, 0], [], []>} : vector<8x8xf32>, vector<8x8xf32>, vector<8x8xf32> -> vector<8x8xf32>
    %cst_10 = arith.constant 0.353553385 : f32
    %9 = vector.broadcast %cst_10 : f32 to vector<8x8xf32>
    %10 = arith.mulf %8, %9 : vector<8x8xf32>
    %cst_11 = arith.constant 0.000000e+00 : f32
    %11 = vector.broadcast %cst_11 : f32 to vector<1x8xf32>
    %12 = arith.cmpf oeq, %1, %11 : vector<1x8xf32>
    %cst_12 = arith.constant 0xFF800000 : f32
    %13 = vector.shape_cast %12 : vector<1x8xi1> to vector<1x8xi1>
    %14 = vector.broadcast %13 : vector<1x8xi1> to vector<8x8xi1>
    %15 = vector.broadcast %cst_12 : f32 to vector<8x8xf32>
    %16 = arith.select %14, %15, %10 : vector<8x8xi1>, vector<8x8xf32>
    %c0_13 = arith.constant 0 : index
    %c0_14 = arith.constant 0 : index
    %c0_15 = arith.constant 0 : index
    %c0_16 = arith.constant 0 : index
    %17 = vector.load %arg4[%c0_13, %c0_14, %c0_15, %c0_16] : memref<1x4x8x8xf32, #tpu.memory_space<vmem>>, vector<1x1x8x8xf32>
    %18 = vector.shape_cast %17 : vector<1x1x8x8xf32> to vector<8x8xf32>
    %19 = vector.shape_cast %16 : vector<8x8xf32> to vector<1x1x8x8xf32>
    tpu.vector_store %arg4[%c0_13, %c0_14, %c0_15, %c0_16], %19 {strides = array<i32>} : memref<1x4x8x8xf32, #tpu.memory_space<vmem>>, vector<1x1x8x8xf32>,
    %cst_17 = arith.constant dense<0xFF800000> : vector<8xf32>
    %20 = vector.multi_reduction <maximumf>, %16, %cst_17 [1] : vector<8x8xf32> to vector<8xf32>
    %21 = vector.shape_cast %20 : vector<8xf32> to vector<8x1xf32>
    %22 = vector.broadcast %21 : vector<8x1xf32> to vector<8x8xf32>
    %23 = arith.subf %16, %22 : vector<8x8xf32>
    %24 = math.exp %23 : vector<8x8xf32>
    %cst_18 = arith.constant dense<0.000000e+00> : vector<8xf32>
    %25 = vector.multi_reduction <add>, %24, %cst_18 [1] : vector<8x8xf32> to vector<8xf32>
    %26 = vector.shape_cast %25 : vector<8xf32> to vector<8x1xf32>
    %27 = tpu.reciprocal %26 {approx = true} : vector<8x1xf32> -> vector<8x1xf32>
    %28 = vector.broadcast %27 : vector<8x1xf32> to vector<8x8xf32>
    %29 = arith.mulf %24, %28 : vector<8x8xf32>
    %cst_19 = arith.constant dense<0.000000e+00> : vector<8x8xf32>
    %30 = tpu.matmul %29, %7, %cst_19 {dimension_numbers = #tpu.dot_dimension_numbers<[1], [0], [0], [1], [0, 0, 1, 1], [], []>} : vector<8x8xf32>, vector<8x8xf32>, vector<8x8xf32> -> vector<8x8xf32>
    %c0_20 = arith.constant 0 : index
    %c0_21 = arith.constant 0 : index
    %c0_22 = arith.constant 0 : index
    %31 = vector.load %arg5[%c0_20, %c0_21, %c0_22] : memref<1x8x32xf32, #tpu.memory_space<vmem>>, vector<1x8x8xf32>
    %32 = vector.shape_cast %31 : vector<1x8x8xf32> to vector<8x8xf32>
    %33 = vector.shape_cast %30 : vector<8x8xf32> to vector<1x8x8xf32>
    tpu.vector_store %arg5[%c0_20, %c0_21, %c0_22], %33 {strides = array<i32>} : memref<1x8x32xf32, #tpu.memory_space<vmem>>, vector<1x8x8xf32>,
    %c0_23 = arith.constant 0 : index
    %c0_24 = arith.constant 0 : index
    %c8 = arith.constant 8 : index
    %34 = vector.load %arg1[%c0_23, %c0_24, %c8] : memref<1x8x32xf32, #tpu.memory_space<vmem>>, vector<1x8x8xf32>
    %35 = vector.shape_cast %34 : vector<1x8x8xf32> to vector<8x8xf32>
    %c0_25 = arith.constant 0 : index
    %c0_26 = arith.constant 0 : index
    %c8_27 = arith.constant 8 : index
    %36 = vector.load %arg2[%c0_25, %c0_26, %c8_27] : memref<1x8x64xf32, #tpu.memory_space<vmem>>, vector<1x8x8xf32>
    %37 = vector.shape_cast %36 : vector<1x8x8xf32> to vector<8x8xf32>
    %c0_28 = arith.constant 0 : index
    %c0_29 = arith.constant 0 : index
    %c40 = arith.constant 40 : index
    %38 = vector.load %arg2[%c0_28, %c0_29, %c40] : memref<1x8x64xf32, #tpu.memory_space<vmem>>, vector<1x8x8xf32>
    %39 = vector.shape_cast %38 : vector<1x8x8xf32> to vector<8x8xf32>
    %cst_30 = arith.constant dense<0.000000e+00> : vector<8x8xf32>
    %40 = tpu.matmul %35, %37, %cst_30 {dimension_numbers = #tpu.dot_dimension_numbers<[1], [1], [0], [0], [0, 0, 1, 0], [], []>} : vector<8x8xf32>, vector<8x8xf32>, vector<8x8xf32> -> vector<8x8xf32>
    %cst_31 = arith.constant 0.353553385 : f32
    %41 = vector.broadcast %cst_31 : f32 to vector<8x8xf32>
    %42 = arith.mulf %40, %41 : vector<8x8xf32>
    %cst_32 = arith.constant 0.000000e+00 : f32
    %43 = vector.broadcast %cst_32 : f32 to vector<1x8xf32>
    %44 = arith.cmpf oeq, %1, %43 : vector<1x8xf32>
    %cst_33 = arith.constant 0xFF800000 : f32
    %45 = vector.shape_cast %44 : vector<1x8xi1> to vector<1x8xi1>
    %46 = vector.broadcast %45 : vector<1x8xi1> to vector<8x8xi1>
    %47 = vector.broadcast %cst_33 : f32 to vector<8x8xf32>
    %48 = arith.select %46, %47, %42 : vector<8x8xi1>, vector<8x8xf32>
    %c0_34 = arith.constant 0 : index
    %c1 = arith.constant 1 : index
    %c0_35 = arith.constant 0 : index
    %c0_36 = arith.constant 0 : index
    %49 = vector.load %arg4[%c0_34, %c1, %c0_35, %c0_36] : memref<1x4x8x8xf32, #tpu.memory_space<vmem>>, vector<1x1x8x8xf32>
    %50 = vector.shape_cast %49 : vector<1x1x8x8xf32> to vector<8x8xf32>
    %51 = vector.shape_cast %48 : vector<8x8xf32> to vector<1x1x8x8xf32>
    tpu.vector_store %arg4[%c0_34, %c1, %c0_35, %c0_36], %51 {strides = array<i32>} : memref<1x4x8x8xf32, #tpu.memory_space<vmem>>, vector<1x1x8x8xf32>,
    %cst_37 = arith.constant dense<0xFF800000> : vector<8xf32>
    %52 = vector.multi_reduction <maximumf>, %48, %cst_37 [1] : vector<8x8xf32> to vector<8xf32>
    %53 = vector.shape_cast %52 : vector<8xf32> to vector<8x1xf32>
    %54 = vector.broadcast %53 : vector<8x1xf32> to vector<8x8xf32>
    %55 = arith.subf %48, %54 : vector<8x8xf32>
    %56 = math.exp %55 : vector<8x8xf32>
    %cst_38 = arith.constant dense<0.000000e+00> : vector<8xf32>
    %57 = vector.multi_reduction <add>, %56, %cst_38 [1] : vector<8x8xf32> to vector<8xf32>
    %58 = vector.shape_cast %57 : vector<8xf32> to vector<8x1xf32>
    %59 = tpu.reciprocal %58 {approx = true} : vector<8x1xf32> -> vector<8x1xf32>
    %60 = vector.broadcast %59 : vector<8x1xf32> to vector<8x8xf32>
    %61 = arith.mulf %56, %60 : vector<8x8xf32>
    %cst_39 = arith.constant dense<0.000000e+00> : vector<8x8xf32>
    %62 = tpu.matmul %61, %39, %cst_39 {dimension_numbers = #tpu.dot_dimension_numbers<[1], [0], [0], [1], [0, 0, 1, 1], [], []>} : vector<8x8xf32>, vector<8x8xf32>, vector<8x8xf32> -> vector<8x8xf32>
    %c0_40 = arith.constant 0 : index
    %c0_41 = arith.constant 0 : index
    %c8_42 = arith.constant 8 : index
    %63 = vector.load %arg5[%c0_40, %c0_41, %c8_42] : memref<1x8x32xf32, #tpu.memory_space<vmem>>, vector<1x8x8xf32>
    %64 = vector.shape_cast %63 : vector<1x8x8xf32> to vector<8x8xf32>
    %65 = vector.shape_cast %62 : vector<8x8xf32> to vector<1x8x8xf32>
    tpu.vector_store %arg5[%c0_40, %c0_41, %c8_42], %65 {strides = array<i32>} : memref<1x8x32xf32, #tpu.memory_space<vmem>>, vector<1x8x8xf32>,
    %c0_43 = arith.constant 0 : index
    %c0_44 = arith.constant 0 : index
    %c16 = arith.constant 16 : index
    %66 = vector.load %arg1[%c0_43, %c0_44, %c16] : memref<1x8x32xf32, #tpu.memory_space<vmem>>, vector<1x8x8xf32>
    %67 = vector.shape_cast %66 : vector<1x8x8xf32> to vector<8x8xf32>
    %c0_45 = arith.constant 0 : index
    %c0_46 = arith.constant 0 : index
    %c16_47 = arith.constant 16 : index
    %68 = vector.load %arg2[%c0_45, %c0_46, %c16_47] : memref<1x8x64xf32, #tpu.memory_space<vmem>>, vector<1x8x8xf32>
    %69 = vector.shape_cast %68 : vector<1x8x8xf32> to vector<8x8xf32>
    %c0_48 = arith.constant 0 : index
    %c0_49 = arith.constant 0 : index
    %c48 = arith.constant 48 : index
    %70 = vector.load %arg2[%c0_48, %c0_49, %c48] : memref<1x8x64xf32, #tpu.memory_space<vmem>>, vector<1x8x8xf32>
    %71 = vector.shape_cast %70 : vector<1x8x8xf32> to vector<8x8xf32>
    %cst_50 = arith.constant dense<0.000000e+00> : vector<8x8xf32>
    %72 = tpu.matmul %67, %69, %cst_50 {dimension_numbers = #tpu.dot_dimension_numbers<[1], [1], [0], [0], [0, 0, 1, 0], [], []>} : vector<8x8xf32>, vector<8x8xf32>, vector<8x8xf32> -> vector<8x8xf32>
    %cst_51 = arith.constant 0.353553385 : f32
    %73 = vector.broadcast %cst_51 : f32 to vector<8x8xf32>
    %74 = arith.mulf %72, %73 : vector<8x8xf32>
    %cst_52 = arith.constant 0.000000e+00 : f32
    %75 = vector.broadcast %cst_52 : f32 to vector<1x8xf32>
    %76 = arith.cmpf oeq, %1, %75 : vector<1x8xf32>
    %cst_53 = arith.constant 0xFF800000 : f32
    %77 = vector.shape_cast %76 : vector<1x8xi1> to vector<1x8xi1>
    %78 = vector.broadcast %77 : vector<1x8xi1> to vector<8x8xi1>
    %79 = vector.broadcast %cst_53 : f32 to vector<8x8xf32>
    %80 = arith.select %78, %79, %74 : vector<8x8xi1>, vector<8x8xf32>
    %c0_54 = arith.constant 0 : index
    %c2 = arith.constant 2 : index
    %c0_55 = arith.constant 0 : index
    %c0_56 = arith.constant 0 : index
    %81 = vector.load %arg4[%c0_54, %c2, %c0_55, %c0_56] : memref<1x4x8x8xf32, #tpu.memory_space<vmem>>, vector<1x1x8x8xf32>
    %82 = vector.shape_cast %81 : vector<1x1x8x8xf32> to vector<8x8xf32>
    %83 = vector.shape_cast %80 : vector<8x8xf32> to vector<1x1x8x8xf32>
    tpu.vector_store %arg4[%c0_54, %c2, %c0_55, %c0_56], %83 {strides = array<i32>} : memref<1x4x8x8xf32, #tpu.memory_space<vmem>>, vector<1x1x8x8xf32>,
    %cst_57 = arith.constant dense<0xFF800000> : vector<8xf32>
    %84 = vector.multi_reduction <maximumf>, %80, %cst_57 [1] : vector<8x8xf32> to vector<8xf32>
    %85 = vector.shape_cast %84 : vector<8xf32> to vector<8x1xf32>
    %86 = vector.broadcast %85 : vector<8x1xf32> to vector<8x8xf32>
    %87 = arith.subf %80, %86 : vector<8x8xf32>
    %88 = math.exp %87 : vector<8x8xf32>
    %cst_58 = arith.constant dense<0.000000e+00> : vector<8xf32>
    %89 = vector.multi_reduction <add>, %88, %cst_58 [1] : vector<8x8xf32> to vector<8xf32>
    %90 = vector.shape_cast %89 : vector<8xf32> to vector<8x1xf32>
    %91 = tpu.reciprocal %90 {approx = true} : vector<8x1xf32> -> vector<8x1xf32>
    %92 = vector.broadcast %91 : vector<8x1xf32> to vector<8x8xf32>
    %93 = arith.mulf %88, %92 : vector<8x8xf32>
    %cst_59 = arith.constant dense<0.000000e+00> : vector<8x8xf32>
    %94 = tpu.matmul %93, %71, %cst_59 {dimension_numbers = #tpu.dot_dimension_numbers<[1], [0], [0], [1], [0, 0, 1, 1], [], []>} : vector<8x8xf32>, vector<8x8xf32>, vector<8x8xf32> -> vector<8x8xf32>
    %c0_60 = arith.constant 0 : index
    %c0_61 = arith.constant 0 : index
    %c16_62 = arith.constant 16 : index
    %95 = vector.load %arg5[%c0_60, %c0_61, %c16_62] : memref<1x8x32xf32, #tpu.memory_space<vmem>>, vector<1x8x8xf32>
    %96 = vector.shape_cast %95 : vector<1x8x8xf32> to vector<8x8xf32>
    %97 = vector.shape_cast %94 : vector<8x8xf32> to vector<1x8x8xf32>
    tpu.vector_store %arg5[%c0_60, %c0_61, %c16_62], %97 {strides = array<i32>} : memref<1x8x32xf32, #tpu.memory_space<vmem>>, vector<1x8x8xf32>,
    %c0_63 = arith.constant 0 : index
    %c0_64 = arith.constant 0 : index
    %c24 = arith.constant 24 : index
    %98 = vector.load %arg1[%c0_63, %c0_64, %c24] : memref<1x8x32xf32, #tpu.memory_space<vmem>>, vector<1x8x8xf32>
    %99 = vector.shape_cast %98 : vector<1x8x8xf32> to vector<8x8xf32>
    %c0_65 = arith.constant 0 : index
    %c0_66 = arith.constant 0 : index
    %c24_67 = arith.constant 24 : index
    %100 = vector.load %arg2[%c0_65, %c0_66, %c24_67] : memref<1x8x64xf32, #tpu.memory_space<vmem>>, vector<1x8x8xf32>
    %101 = vector.shape_cast %100 : vector<1x8x8xf32> to vector<8x8xf32>
    %c0_68 = arith.constant 0 : index
    %c0_69 = arith.constant 0 : index
    %c56 = arith.constant 56 : index
    %102 = vector.load %arg2[%c0_68, %c0_69, %c56] : memref<1x8x64xf32, #tpu.memory_space<vmem>>, vector<1x8x8xf32>
    %103 = vector.shape_cast %102 : vector<1x8x8xf32> to vector<8x8xf32>
    %cst_70 = arith.constant dense<0.000000e+00> : vector<8x8xf32>
    %104 = tpu.matmul %99, %101, %cst_70 {dimension_numbers = #tpu.dot_dimension_numbers<[1], [1], [0], [0], [0, 0, 1, 0], [], []>} : vector<8x8xf32>, vector<8x8xf32>, vector<8x8xf32> -> vector<8x8xf32>
    %cst_71 = arith.constant 0.353553385 : f32
    %105 = vector.broadcast %cst_71 : f32 to vector<8x8xf32>
    %106 = arith.mulf %104, %105 : vector<8x8xf32>
    %cst_72 = arith.constant 0.000000e+00 : f32
    %107 = vector.broadcast %cst_72 : f32 to vector<1x8xf32>
    %108 = arith.cmpf oeq, %1, %107 : vector<1x8xf32>
    %cst_73 = arith.constant 0xFF800000 : f32
    %109 = vector.shape_cast %108 : vector<1x8xi1> to vector<1x8xi1>
    %110 = vector.broadcast %109 : vector<1x8xi1> to vector<8x8xi1>
    %111 = vector.broadcast %cst_73 : f32 to vector<8x8xf32>
    %112 = arith.select %110, %111, %106 : vector<8x8xi1>, vector<8x8xf32>
    %c0_74 = arith.constant 0 : index
    %c3 = arith.constant 3 : index
    %c0_75 = arith.constant 0 : index
    %c0_76 = arith.constant 0 : index
    %113 = vector.load %arg4[%c0_74, %c3, %c0_75, %c0_76] : memref<1x4x8x8xf32, #tpu.memory_space<vmem>>, vector<1x1x8x8xf32>
    %114 = vector.shape_cast %113 : vector<1x1x8x8xf32> to vector<8x8xf32>
    %115 = vector.shape_cast %112 : vector<8x8xf32> to vector<1x1x8x8xf32>
    tpu.vector_store %arg4[%c0_74, %c3, %c0_75, %c0_76], %115 {strides = array<i32>} : memref<1x4x8x8xf32, #tpu.memory_space<vmem>>, vector<1x1x8x8xf32>,
    %cst_77 = arith.constant dense<0xFF800000> : vector<8xf32>
    %116 = vector.multi_reduction <maximumf>, %112, %cst_77 [1] : vector<8x8xf32> to vector<8xf32>
    %117 = vector.shape_cast %116 : vector<8xf32> to vector<8x1xf32>
    %118 = vector.broadcast %117 : vector<8x1xf32> to vector<8x8xf32>
    %119 = arith.subf %112, %118 : vector<8x8xf32>
    %120 = math.exp %119 : vector<8x8xf32>
    %cst_78 = arith.constant dense<0.000000e+00> : vector<8xf32>
    %121 = vector.multi_reduction <add>, %120, %cst_78 [1] : vector<8x8xf32> to vector<8xf32>
    %122 = vector.shape_cast %121 : vector<8xf32> to vector<8x1xf32>
    %123 = tpu.reciprocal %122 {approx = true} : vector<8x1xf32> -> vector<8x1xf32>
    %124 = vector.broadcast %123 : vector<8x1xf32> to vector<8x8xf32>
    %125 = arith.mulf %120, %124 : vector<8x8xf32>
    %cst_79 = arith.constant dense<0.000000e+00> : vector<8x8xf32>
    %126 = tpu.matmul %125, %103, %cst_79 {dimension_numbers = #tpu.dot_dimension_numbers<[1], [0], [0], [1], [0, 0, 1, 1], [], []>} : vector<8x8xf32>, vector<8x8xf32>, vector<8x8xf32> -> vector<8x8xf32>
    %c0_80 = arith.constant 0 : index
    %c0_81 = arith.constant 0 : index
    %c24_82 = arith.constant 24 : index
    %127 = vector.load %arg5[%c0_80, %c0_81, %c24_82] : memref<1x8x32xf32, #tpu.memory_space<vmem>>, vector<1x8x8xf32>
    %128 = vector.shape_cast %127 : vector<1x8x8xf32> to vector<8x8xf32>
    %129 = vector.shape_cast %126 : vector<8x8xf32> to vector<1x8x8xf32>
    tpu.vector_store %arg5[%c0_80, %c0_81, %c24_82], %129 {strides = array<i32>} : memref<1x8x32xf32, #tpu.memory_space<vmem>>, vector<1x8x8xf32>,
    return
  }
  func.func @transform_0(%arg0: i32) -> (i32, i32, i32) {
    %c0_i32 = arith.constant 0 : i32
    %c0_i32_0 = arith.constant 0 : i32
    %c0_i32_1 = arith.constant 0 : i32
    return %arg0, %c0_i32, %c0_i32_0 : i32, i32, i32
  }
  func.func @transform_1(%arg0: i32) -> (i32, i32, i32) {
    %c0_i32 = arith.constant 0 : i32
    %c0_i32_0 = arith.constant 0 : i32
    %c0_i32_1 = arith.constant 0 : i32
    return %arg0, %c0_i32, %c0_i32_0 : i32, i32, i32
  }
  func.func @transform_2(%arg0: i32) -> (i32, i32, i32) {
    %c0_i32 = arith.constant 0 : i32
    %c0_i32_0 = arith.constant 0 : i32
    %c0_i32_1 = arith.constant 0 : i32
    return %arg0, %c0_i32, %c0_i32_0 : i32, i32, i32
  }
  func.func @transform_3(%arg0: i32) -> (i32, i32, i32, i32) {
    %c0_i32 = arith.constant 0 : i32
    %c0_i32_0 = arith.constant 0 : i32
    %c0_i32_1 = arith.constant 0 : i32
    %c0_i32_2 = arith.constant 0 : i32
    return %arg0, %c0_i32, %c0_i32_0, %c0_i32_1 : i32, i32, i32, i32
  }
  func.func @transform_4(%arg0: i32) -> (i32, i32, i32) {
    %c0_i32 = arith.constant 0 : i32
    %c0_i32_0 = arith.constant 0 : i32
    %c0_i32_1 = arith.constant 0 : i32
    return %arg0, %c0_i32, %c0_i32_0 : i32, i32, i32
  }
}

</mosaic_0001>

<llo_original>
// kernel: cross_attention_selector.4
$region0: #{cross_attention_selector.4}
  #allocation0 [shape = 'u32[]', space=smem, size = 0x4, offset = 0x4, fixed_abs, tag = 'smem constant byte address 0x4 - core index']
  #allocation1 [shape = 'u32[144,128]{1,0:T(1,128)}', space=vmem, size = 0x12000, scoped, tag = 'internal scratch']
  #allocation2 [shape = 'f32[16,64]{1,0:T(8,128)}', space=vmem, size = 0x2000, scoped, tag = 'scratch operand']
  %s0 = inlined_call_operand.vmem [shape: f32[16,32], index: 0, kind: input, shape index: {}]
  %s1 = inlined_call_operand.vmem [shape: f32[64,32], index: 1, kind: input, shape index: {}]
  %s2 = inlined_call_operand.vmem [shape: f32[1,64], index: 2, kind: input, shape index: {}]
  %s3 = inlined_call_operand.vmem [shape: f32[16,64], index: 3, kind: output, shape index: {}]
  %s4 = sld [smem:[#allocation0]]
  $region30: #{cross_attention_selector.4} parent=0
    _
  %s6 = ssub.s32 1, %s4
  %s7 = scalar_select 0, %s6, %s4
  // Predicated region
  $region2: #{cross_attention_selector.4} parent=0 // pred_check
    _
  $region3: #{cross_attention_selector.4} parent=0 // pred_check_branch
    %9 = sbr.rel (0) target = $region5
  $region4: #{cross_attention_selector.4} parent=0 // pred_region
    _
  $region5: #{cross_attention_selector.4} parent=0 // pred_fallthru
    _
  // Predicated region
  $region6: #{cross_attention_selector.4} parent=0 // pred_check
    _
  $region7: #{cross_attention_selector.4} parent=0 // pred_check_branch
    %11 = sbr.rel (0) target = $region9
  $region8: #{cross_attention_selector.4} parent=0 // pred_region
    _
  $region9: #{cross_attention_selector.4} parent=0 // pred_fallthru
    _
  // Predicated region
  $region10: #{cross_attention_selector.4} parent=0 // pred_check
    _
  $region11: #{cross_attention_selector.4} parent=0 // pred_check_branch
    %13 = sbr.rel (0) target = $region13
  $region12: #{cross_attention_selector.4} parent=0 // pred_region
    _
  $region13: #{cross_attention_selector.4} parent=0 // pred_fallthru
    _
  %p14 = scmp.eq.s32.totalorder 0, 0
  // Predicated region
  $region14: #{cross_attention_selector.4} parent=0 // pred_check
    %p15 = pneg %p14
  $region15: #{cross_attention_selector.4} parent=0 // pred_check_branch
    %17 = sbr.rel (%p15) target = $region17
  $region16: #{cross_attention_selector.4} parent=0 // pred_region
    %vm18 = vcmask 523264
    %19 = vst.msk [vmem:[#allocation2] sm:$0xff] %vm18, 0.0
    %20 = vst.msk [vmem:[#allocation2 + $0x8] sm:$0xff] %vm18, 0.0
  $region17: #{cross_attention_selector.4} parent=0 // pred_fallthru
    _
  %v21 = vld [vmem:[#allocation2] sm:$0xff]
  %v22 = vld [vmem:[#allocation2 + $0x8] sm:$0xff]
  %v23 = vld [vmem:[%s0] sm:$0xff]
  %v24 = vld [vmem:[%s0 + $0x8] sm:$0xff]
  %v25 = vld [vmem:[%s1] sm:$0xff]
  %v26 = vld [vmem:[%s1 + $0x8] sm:$0xff]
  %v27 = vld [vmem:[%s1 + $0x10] sm:$0xff]
  %v28 = vld [vmem:[%s1 + $0x18] sm:$0xff]
  %v29 = vld [vmem:[%s1 + $0x20] sm:$0xff]
  %v30 = vld [vmem:[%s1 + $0x28] sm:$0xff]
  %v31 = vld [vmem:[%s1 + $0x30] sm:$0xff]
  %v32 = vld [vmem:[%s1 + $0x38] sm:$0xff]
  %vm33 = vcmask 261120
  %v35 = vsel %vm33, %v23, 0
  %v38 = vsel %vm33, %v24, 0
  %v41 = vsel %vm33, %v25, 0
  %v44 = vsel %vm33, %v26, 0
  %v47 = vsel %vm33, %v27, 0
  %v50 = vsel %vm33, %v28, 0
  %v53 = vsel %vm33, %v29, 0
  %v56 = vsel %vm33, %v30, 0
  %v59 = vsel %vm33, %v31, 0
  %v62 = vsel %vm33, %v32, 0
  %64 = vmatprep.subr.mxu0 0.0
  %65 = vmatpush1.xpose.msra.mxu0 0.0
  %66 = vmatprep.subr.mxu0 0.0
  %67 = vmatpush1.xpose.msra.mxu0 0.0
  %68 = vmatprep.subr.mxu0 0.0
  %69 = vmatpush1.xpose.msra.mxu0 0.0
  %70 = vmatprep.subr.mxu0 0.0
  %71 = vmatpush1.xpose.msra.mxu0 0.0
  %72 = vmatprep.subr.mxu0 0.0
  %73 = vmatpush1.xpose.msra.mxu0 0.0
  %74 = vmatprep.subr.mxu0 0.0
  %75 = vmatpush1.xpose.msra.mxu0 0.0
  %76 = vmatprep.subr.mxu0 0.0
  %77 = vmatpush1.xpose.msra.mxu0 0.0
  %78 = vmatprep.subr.mxu0 0.0
  %79 = vmatpush1.xpose.msra.mxu0 0.0
  %80 = vmatprep.subr.mxu0 0.0
  %81 = vmatpush1.xpose.msra.mxu0 %v62
  %82 = vmatprep.subr.mxu0 0.0
  %83 = vmatpush1.xpose.msra.mxu0 %v59
  %84 = vmatprep.subr.mxu0 0.0
  %85 = vmatpush1.xpose.msra.mxu0 %v56
  %86 = vmatprep.subr.mxu0 0.0
  %87 = vmatpush1.xpose.msra.mxu0 %v53
  %88 = vmatprep.subr.mxu0 0.0
  %89 = vmatpush1.xpose.msra.mxu0 %v50
  %90 = vmatprep.subr.mxu0 0.0
  %91 = vmatpush1.xpose.msra.mxu0 %v47
  %92 = vmatprep.subr.mxu0 0.0
  %93 = vmatpush1.xpose.msra.mxu0 %v44
  %94 = vmatprep.subr.mxu0 0.0
  %95 = vmatpush1.xpose.msra.mxu0 %v41
  %96 = vmatprep.subr.mxu0 0.0
  %97 = vmatpush2.xpose.msra.mxu0 0.0
  %98 = vmatprep.subr.mxu0 0.0
  %99 = vmatpush2.xpose.msra.mxu0 0.0
  %100 = vmatprep.subr.mxu0 0.0
  %101 = vmatpush2.xpose.msra.mxu0 0.0
  %102 = vmatprep.subr.mxu0 0.0
  %103 = vmatpush2.xpose.msra.mxu0 0.0
  %104 = vmatprep.subr.mxu0 0.0
  %105 = vmatpush2.xpose.msra.mxu0 0.0
  %106 = vmatprep.subr.mxu0 0.0
  %107 = vmatpush2.xpose.msra.mxu0 0.0
  %108 = vmatprep.subr.mxu0 0.0
  %109 = vmatpush2.xpose.msra.mxu0 0.0
  %110 = vmatprep.subr.mxu0 0.0
  %111 = vmatpush2.xpose.msra.mxu0 0.0
  %112 = vmatprep.subr.mxu0 0.0
  %113 = vmatpush2.xpose.msra.mxu0 0.0
  %114 = vmatprep.subr.mxu0 0.0
  %115 = vmatpush2.xpose.msra.mxu0 0.0
  %116 = vmatprep.subr.mxu0 0.0
  %117 = vmatpush2.xpose.msra.mxu0 0.0
  %118 = vmatprep.subr.mxu0 0.0
  %119 = vmatpush2.xpose.msra.mxu0 0.0
  %120 = vmatprep.subr.mxu0 0.0
  %121 = vmatpush2.xpose.msra.mxu0 0.0
  %122 = vmatprep.subr.mxu0 0.0
  %123 = vmatpush2.xpose.msra.mxu0 0.0
  %124 = vmatprep.subr.mxu0 0.0
  %125 = vmatpush2.xpose.msra.mxu0 0.0
  %126 = vmatprep.subr.mxu0 0.0
  %127 = vmatpush2.xpose.msra.mxu0 0.0
  %128 = vmatprep.mubr.f32.mxu0 0.0
  %129 = vmatmul.mubr.f32.gmra.mxu0 %v35
  %v130 = vpop.f32.mrf.mxu0
  %v131 = vadd.f32 0.0, %v130
  %v132 = vpop.f32.mrf.mxu0
  %133 = vmatprep.mubr.f32.mxu0 0.0
  %134 = vmatmul.mubr.f32.gmra.mxu0 %v38
  %v135 = vpop.f32.mrf.mxu0
  %v136 = vadd.f32 0.0, %v135
  %v137 = vpop.f32.mrf.mxu0
  %138 = vdwg.mxu0
  %v139 = vadd.f32 %v21, %v131
  %v140 = vadd.f32 %v22, %v136
  %vm141 = vcmask 523264
  %142 = vst.msk [vmem:[#allocation2] sm:$0xff] %vm141, %v139
  %143 = vst.msk [vmem:[#allocation2 + $0x8] sm:$0xff] %vm141, %v140
  // Predicated region
  $region18: #{cross_attention_selector.4} parent=0 // pred_check
    %p144 = pneg %p14
  $region19: #{cross_attention_selector.4} parent=0 // pred_check_branch
    %146 = sbr.rel (%p144) target = $region21
  $region20: #{cross_attention_selector.4} parent=0 // pred_region
    %v147 = vld [vmem:[#allocation2] sm:$0xff]
    %v148 = vld [vmem:[#allocation2 + $0x8] sm:$0xff]
    %v149 = vld [vmem:[%s2] sm:$0x1]
    %v151 = vlaneseq
    %v152 = vshrl.u32 %v151, 7
    %v153 = vsub.s32 0, %v152
    %v154 = vrot.slane %v149, %v153
    %v156 = vadd.f32 %v147, %v154
    %v157 = vadd.f32 %v148, %v154
    %158 = vst.msk [vmem:[%s3] sm:$0xff] %vm141, %v156
    %159 = vst.msk [vmem:[%s3 + $0x8] sm:$0xff] %vm141, %v157
  $region21: #{cross_attention_selector.4} parent=0 // pred_fallthru
    _
  // Predicated region
  $region22: #{cross_attention_selector.4} parent=0 // pred_check
    _
  $region23: #{cross_attention_selector.4} parent=0 // pred_check_branch
    %161 = sbr.rel (0) target = $region25
  $region24: #{cross_attention_selector.4} parent=0 // pred_region
    _
  $region25: #{cross_attention_selector.4} parent=0 // pred_fallthru
    _
  // Predicated region
  $region26: #{cross_attention_selector.4} parent=0 // pred_check
    _
  $region27: #{cross_attention_selector.4} parent=0 // pred_check_branch
    %163 = sbr.rel (0) target = $region29
  $region28: #{cross_attention_selector.4} parent=0 // pred_region
    _
  $region29: #{cross_attention_selector.4} parent=0 // pred_fallthru
    _

// kernel: cross_attention_selector.3
$region0: #{cross_attention_selector.3}
  #allocation0 [shape = 'u32[]', space=smem, size = 0x4, offset = 0x4, fixed_abs, tag = 'smem constant byte address 0x4 - core index']
  #allocation1 [shape = 'u32[144,128]{1,0:T(1,128)}', space=vmem, size = 0x12000, scoped, tag = 'internal scratch']
  #allocation2 [shape = 'f32[16,32]{1,0:T(8,128)}', space=vmem, size = 0x2000, scoped, tag = 'scratch operand']
  %s0 = inlined_call_operand.hbm [shape: f32[16,32], index: 0, kind: input, shape index: {}]
  %s1 = inlined_call_operand.hbm [shape: f32[32,32], index: 1, kind: input, shape index: {}]
  %s2 = inlined_call_operand.vmem [shape: f32[1,32], index: 2, kind: input, shape index: {}]
  %s3 = inlined_call_operand.vmem [shape: f32[16,32], index: 3, kind: output, shape index: {}]
  %s4 = sld [smem:[#allocation0]]
  $region38: #{cross_attention_selector.3} parent=0
    _
  %s6 = ssub.s32 1, %s4
  %s7 = scalar_select 0, %s6, %s4
  $region1: #{cross_attention_selector.3} parent=0
    #allocation3 [shape = 'u8[8192]{0}', space=vmem, size = 0x2000, scoped, tag = 'input window, operand 0, single buffered']
    #allocation4 [shape = 's32[1]{0}', space=sflag, size = 0x4, scoped, tag = 'scoped memory for cross_attention_selector.3']
    #allocation5 [shape = 'u8[16384]{0}', space=vmem, size = 0x4000, scoped, tag = 'input window, operand 1, single buffered']
    #allocation6 [shape = 's32[1]{0}', space=sflag, size = 0x4, scoped, tag = 'scoped memory for cross_attention_selector.3']
    %8 = vsyncpa [#allocation4], 0
    %9 = vsyncpa [#allocation6], 0
    // Predicated region
    $region2: #{cross_attention_selector.3} parent=1 // pred_check
      _
    $region3: #{cross_attention_selector.3} parent=1 // pred_check_branch
      %11 = sbr.rel (0) target = $region5
    $region4: #{cross_attention_selector.3} parent=1 // pred_region
      %s13 = ssub.s32 256, 256
      %14 = vsyncadd [#allocation4], %s13
      %s15 = sshll.u32 [#allocation3], 4
      %s16 = int_to_ptr.vmem [resolvable:$true] %s15
      %21 = dma.hbm_to_vmem [thread:$0]  %s0, 256, %s16, [#allocation4], 128, 128, 8
    $region5: #{cross_attention_selector.3} parent=1 // pred_fallthru
      _
    // Predicated region
    $region6: #{cross_attention_selector.3} parent=1 // pred_check
      _
    $region7: #{cross_attention_selector.3} parent=1 // pred_check_branch
      %23 = sbr.rel (0) target = $region9
    $region8: #{cross_attention_selector.3} parent=1 // pred_region
      %s25 = ssub.s32 512, 512
      %26 = vsyncadd [#allocation6], %s25
      %s27 = sshll.u32 [#allocation5], 4
      %s28 = int_to_ptr.vmem [resolvable:$true] %s27
      %33 = dma.hbm_to_vmem [thread:$0]  %s1, 512, %s28, [#allocation6], 128, 128, 8
    $region9: #{cross_attention_selector.3} parent=1 // pred_fallthru
      _
    // Predicated region
    $region10: #{cross_attention_selector.3} parent=1 // pred_check
      _
    $region11: #{cross_attention_selector.3} parent=1 // pred_check_branch
      %35 = sbr.rel (0) target = $region13
    $region12: #{cross_attention_selector.3} parent=1 // pred_region
      _
    $region13: #{cross_attention_selector.3} parent=1 // pred_fallthru
      _
    // Predicated region
    $region14: #{cross_attention_selector.3} parent=1 // pred_check
      _
    $region15: #{cross_attention_selector.3} parent=1 // pred_check_branch
      %37 = sbr.rel (0) target = $region17
    $region16: #{cross_attention_selector.3} parent=1 // pred_region
      %38 = dma.done [#allocation4], 256
    $region17: #{cross_attention_selector.3} parent=1 // pred_fallthru
      _
    // Predicated region
    $region18: #{cross_attention_selector.3} parent=1 // pred_check
      _
    $region19: #{cross_attention_selector.3} parent=1 // pred_check_branch
      %40 = sbr.rel (0) target = $region21
    $region20: #{cross_attention_selector.3} parent=1 // pred_region
      %41 = dma.done [#allocation6], 512
    $region21: #{cross_attention_selector.3} parent=1 // pred_fallthru
      _
    %p42 = scmp.eq.s32.totalorder 0, 0
    // Predicated region
    $region22: #{cross_attention_selector.3} parent=1 // pred_check
      %p43 = pneg %p42
    $region23: #{cross_attention_selector.3} parent=1 // pred_check_branch
      %45 = sbr.rel (%p43) target = $region25
    $region24: #{cross_attention_selector.3} parent=1 // pred_region
      %vm46 = vcmask 261120
      %47 = vst.msk [vmem:[#allocation2] sm:$0xff] %vm46, 0.0
      %48 = vst.msk [vmem:[#allocation2 + $0x8] sm:$0xff] %vm46, 0.0
    $region25: #{cross_attention_selector.3} parent=1 // pred_fallthru
      _
    %v49 = vld [vmem:[#allocation2] sm:$0xff]
    %v50 = vld [vmem:[#allocation2 + $0x8] sm:$0xff]
    %v51 = vld [vmem:[#allocation3] sm:$0xff]
    %v52 = vld [vmem:[#allocation3 + $0x8] sm:$0xff]
    %v53 = vld [vmem:[#allocation5] sm:$0xff]
    %v54 = vld [vmem:[#allocation5 + $0x8] sm:$0xff]
    %v55 = vld [vmem:[#allocation5 + $0x10] sm:$0xff]
    %v56 = vld [vmem:[#allocation5 + $0x18] sm:$0xff]
    %vm57 = vcmask 261120
    %v59 = vsel %vm57, %v51, 0
    %v62 = vsel %vm57, %v52, 0
    %v65 = vsel %vm57, %v53, 0
    %v68 = vsel %vm57, %v54, 0
    %v71 = vsel %vm57, %v55, 0
    %v74 = vsel %vm57, %v56, 0
    %76 = vmatprep.subr.mxu0 0.0
    %77 = vmatpush1.xpose.msra.mxu0 0.0
    %78 = vmatprep.subr.mxu0 0.0
    %79 = vmatpush1.xpose.msra.mxu0 0.0
    %80 = vmatprep.subr.mxu0 0.0
    %81 = vmatpush1.xpose.msra.mxu0 0.0
    %82 = vmatprep.subr.mxu0 0.0
    %83 = vmatpush1.xpose.msra.mxu0 0.0
    %84 = vmatprep.subr.mxu0 0.0
    %85 = vmatpush1.xpose.msra.mxu0 0.0
    %86 = vmatprep.subr.mxu0 0.0
    %87 = vmatpush1.xpose.msra.mxu0 0.0
    %88 = vmatprep.subr.mxu0 0.0
    %89 = vmatpush1.xpose.msra.mxu0 0.0
    %90 = vmatprep.subr.mxu0 0.0
    %91 = vmatpush1.xpose.msra.mxu0 0.0
    %92 = vmatprep.subr.mxu0 0.0
    %93 = vmatpush1.xpose.msra.mxu0 0.0
    %94 = vmatprep.subr.mxu0 0.0
    %95 = vmatpush1.xpose.msra.mxu0 0.0
    %96 = vmatprep.subr.mxu0 0.0
    %97 = vmatpush1.xpose.msra.mxu0 0.0
    %98 = vmatprep.subr.mxu0 0.0
    %99 = vmatpush1.xpose.msra.mxu0 0.0
    %100 = vmatprep.subr.mxu0 0.0
    %101 = vmatpush1.xpose.msra.mxu0 %v74
    %102 = vmatprep.subr.mxu0 0.0
    %103 = vmatpush1.xpose.msra.mxu0 %v71
    %104 = vmatprep.subr.mxu0 0.0
    %105 = vmatpush1.xpose.msra.mxu0 %v68
    %106 = vmatprep.subr.mxu0 0.0
    %107 = vmatpush1.xpose.msra.mxu0 %v65
    %108 = vmatprep.subr.mxu0 0.0
    %109 = vmatpush2.xpose.msra.mxu0 0.0
    %110 = vmatprep.subr.mxu0 0.0
    %111 = vmatpush2.xpose.msra.mxu0 0.0
    %112 = vmatprep.subr.mxu0 0.0
    %113 = vmatpush2.xpose.msra.mxu0 0.0
    %114 = vmatprep.subr.mxu0 0.0
    %115 = vmatpush2.xpose.msra.mxu0 0.0
    %116 = vmatprep.subr.mxu0 0.0
    %117 = vmatpush2.xpose.msra.mxu0 0.0
    %118 = vmatprep.subr.mxu0 0.0
    %119 = vmatpush2.xpose.msra.mxu0 0.0
    %120 = vmatprep.subr.mxu0 0.0
    %121 = vmatpush2.xpose.msra.mxu0 0.0
    %122 = vmatprep.subr.mxu0 0.0
    %123 = vmatpush2.xpose.msra.mxu0 0.0
    %124 = vmatprep.subr.mxu0 0.0
    %125 = vmatpush2.xpose.msra.mxu0 0.0
    %126 = vmatprep.subr.mxu0 0.0
    %127 = vmatpush2.xpose.msra.mxu0 0.0
    %128 = vmatprep.subr.mxu0 0.0
    %129 = vmatpush2.xpose.msra.mxu0 0.0
    %130 = vmatprep.subr.mxu0 0.0
    %131 = vmatpush2.xpose.msra.mxu0 0.0
    %132 = vmatprep.subr.mxu0 0.0
    %133 = vmatpush2.xpose.msra.mxu0 0.0
    %134 = vmatprep.subr.mxu0 0.0
    %135 = vmatpush2.xpose.msra.mxu0 0.0
    %136 = vmatprep.subr.mxu0 0.0
    %137 = vmatpush2.xpose.msra.mxu0 0.0
    %138 = vmatprep.subr.mxu0 0.0
    %139 = vmatpush2.xpose.msra.mxu0 0.0
    %140 = vmatprep.mubr.f32.mxu0 0.0
    %141 = vmatmul.mubr.f32.gmra.mxu0 %v59
    %v142 = vpop.f32.mrf.mxu0
    %v143 = vadd.f32 0.0, %v142
    %v144 = vpop.f32.mrf.mxu0
    %145 = vmatprep.mubr.f32.mxu0 0.0
    %146 = vmatmul.mubr.f32.gmra.mxu0 %v62
    %v147 = vpop.f32.mrf.mxu0
    %v148 = vadd.f32 0.0, %v147
    %v149 = vpop.f32.mrf.mxu0
    %150 = vdwg.mxu0
    %v151 = vadd.f32 %v49, %v143
    %v152 = vadd.f32 %v50, %v148
    %153 = vst.msk [vmem:[#allocation2] sm:$0xff] %vm57, %v151
    %154 = vst.msk [vmem:[#allocation2 + $0x8] sm:$0xff] %vm57, %v152
    // Predicated region
    $region26: #{cross_attention_selector.3} parent=1 // pred_check
      %p155 = pneg %p42
    $region27: #{cross_attention_selector.3} parent=1 // pred_check_branch
      %157 = sbr.rel (%p155) target = $region29
    $region28: #{cross_attention_selector.3} parent=1 // pred_region
      %v158 = vld [vmem:[#allocation2] sm:$0xff]
      %v159 = vld [vmem:[#allocation2 + $0x8] sm:$0xff]
      %v160 = vld [vmem:[%s2] sm:$0x1]
      %v162 = vlaneseq
      %v163 = vshrl.u32 %v162, 7
      %v164 = vsub.s32 0, %v163
      %v165 = vrot.slane %v160, %v164
      %v167 = vadd.f32 %v158, %v165
      %v168 = vadd.f32 %v159, %v165
      %169 = vst.msk [vmem:[%s3] sm:$0xff] %vm57, %v167
      %170 = vst.msk [vmem:[%s3 + $0x8] sm:$0xff] %vm57, %v168
    $region29: #{cross_attention_selector.3} parent=1 // pred_fallthru
      _
    // Predicated region
    $region30: #{cross_attention_selector.3} parent=1 // pred_check
      _
    $region31: #{cross_attention_selector.3} parent=1 // pred_check_branch
      %172 = sbr.rel (0) target = $region33
    $region32: #{cross_attention_selector.3} parent=1 // pred_region
      _
    $region33: #{cross_attention_selector.3} parent=1 // pred_fallthru
      _
    // Predicated region
    $region34: #{cross_attention_selector.3} parent=1 // pred_check
      _
    $region35: #{cross_attention_selector.3} parent=1 // pred_check_branch
      %174 = sbr.rel (0) target = $region37
    $region36: #{cross_attention_selector.3} parent=1 // pred_region
      _
    $region37: #{cross_attention_selector.3} parent=1 // pred_fallthru
      _
    %175 = vsyncpa [#allocation4], 1
    %176 = vsyncpa [#allocation6], 1

// kernel: cross_attention_selector.5
$region0: #{cross_attention_selector.5}
  #allocation0 [shape = 'u32[]', space=smem, size = 0x4, offset = 0x4, fixed_abs, tag = 'smem constant byte address 0x4 - core index']
  #allocation1 [shape = 'u32[144,128]{1,0:T(1,128)}', space=vmem, size = 0x12000, scoped, tag = 'internal scratch']
  %s0 = inlined_call_operand.vmem [shape: f32[2,8,32], index: 0, kind: input, shape index: {}]
  %s1 = inlined_call_operand.vmem [shape: f32[2,8,64], index: 1, kind: input, shape index: {}]
  %s2 = inlined_call_operand.vmem [shape: f32[2,1,8], index: 2, kind: input, shape index: {}]
  %s3 = inlined_call_operand.hbm [shape: f32[2,4,8,8], index: 3, kind: output, shape index: {0}]
  %s4 = inlined_call_operand.hbm [shape: f32[2,8,32], index: 4, kind: output, shape index: {1}]
  %5 = xla_tuple %s3, %s4
  %s6 = sld [smem:[#allocation0]]
  $region53: #{cross_attention_selector.5} parent=0
    _
  %s8 = ssub.s32 1, %s6
  %s9 = scalar_select 0, %s8, %s6
  $region1: #{cross_attention_selector.5} parent=0
    #allocation2 [shape = 'u8[32768]{0}', space=vmem, size = 0x8000, scoped, tag = 'output window, operand 0']
    #allocation3 [shape = 's32[2]{0}', space=sflag, size = 0x8, scoped, tag = 'scoped memory for cross_attention_selector.5']
    #allocation4 [shape = 'u8[8192]{0}', space=vmem, size = 0x2000, scoped, tag = 'output window, operand 1']
    #allocation5 [shape = 's32[2]{0}', space=sflag, size = 0x8, scoped, tag = 'scoped memory for cross_attention_selector.5']
    %10 = vsyncpa [#allocation3], 0
    %s11 = scalar_lea.sflag [#allocation3], 1
    %12 = vsyncpa %s11, 0
    %13 = vsyncpa [#allocation5], 0
    %s14 = scalar_lea.sflag [#allocation5], 1
    %15 = vsyncpa %s14, 0
    loop: start=0, step=1, limit=4
    $region2: #{cross_attention_selector.5} parent=1 // loop_pre_header
      _
    $region3: #{cross_attention_selector.5} parent=1 // loop_header
      %s17 = sphi 0, %s21
      %p18 = scmp.ge.s32.totalorder %s17, 4
      %s27 = sphi 0, %s29
      %s30 = sphi 0, %s27
      %s31 = sphi 0, %s30
      %s47 = sphi 0, %s31
      %s53 = sphi 0, %s55
      %s56 = sphi 0, %s53
      %s57 = sphi 0, %s56
      %s73 = sphi 0, %s57
      %s79 = sphi 0, %s81
      %s82 = sphi 0, %s79
      %s83 = sphi 0, %s82
      %s99 = sphi 0, %s83
      %s105 = sphi 0, %s107
      %s108 = sphi 0, %s105
      %s109 = sphi 0, %s108
      %s125 = sphi 0, %s109
      %s131 = sphi 0, %s133
      %s134 = sphi 0, %s131
      %s135 = sphi 0, %s134
      %s151 = sphi 0, %s135
    $region4: #{cross_attention_selector.5} parent=1 // loop_header_branch
      %20 = sbr.rel (%p18) target = $region8
    $region5: #{cross_attention_selector.5} parent=1 // loop_body
      %s22 = ssub.s32 %s17, 1
      %s23 = ssub.s32 %s17, 2
      %s24 = sadd.s32 %s17, 1
      %s25 = ssub.s32 %s17, %s24
      %p26 = scmp.eq.s32.totalorder %s25, 0
      %s28 = sadd.s32 %s27, 1
      %s29 = scalar_select %p26, %s27, %s28
      %p32 = pneg %p26
      %p33 = scmp.eq.s32.totalorder %s17, 1
      %p34 = por %p32, %p33
      %p35 = scmp.ne.s32.totalorder %s27, %s30
      %p36 = scmp.eq.s32.totalorder %s17, 0
      %p37 = por %p35, %p36
      %p38 = scmp.ne.s32.totalorder %s27, %s30
      %p39 = scmp.eq.s32.totalorder %s22, 1
      %p40 = por %p38, %p39
      %p41 = scmp.ne.s32.totalorder %s30, %s31
      %p42 = scmp.eq.s32.totalorder %s22, 0
      %p43 = por %p41, %p42
      %p44 = scmp.ne.s32.totalorder %s30, %s31
      %p45 = scmp.eq.s32.totalorder %s23, 1
      %p46 = por %p44, %p45
      %p48 = scmp.ne.s32.totalorder %s31, %s47
      %p49 = scmp.eq.s32.totalorder %s23, 0
      %p50 = por %p48, %p49
      %s51 = ssub.s32 %s17, %s24
      %p52 = scmp.eq.s32.totalorder %s51, 0
      %s54 = sadd.s32 %s53, 1
      %s55 = scalar_select %p52, %s53, %s54
      %p58 = pneg %p52
      %p59 = scmp.eq.s32.totalorder %s17, 1
      %p60 = por %p58, %p59
      %p61 = scmp.ne.s32.totalorder %s53, %s56
      %p62 = scmp.eq.s32.totalorder %s17, 0
      %p63 = por %p61, %p62
      %p64 = scmp.ne.s32.totalorder %s53, %s56
      %p65 = scmp.eq.s32.totalorder %s22, 1
      %p66 = por %p64, %p65
      %p67 = scmp.ne.s32.totalorder %s56, %s57
      %p68 = scmp.eq.s32.totalorder %s22, 0
      %p69 = por %p67, %p68
      %p70 = scmp.ne.s32.totalorder %s56, %s57
      %p71 = scmp.eq.s32.totalorder %s23, 1
      %p72 = por %p70, %p71
      %p74 = scmp.ne.s32.totalorder %s57, %s73
      %p75 = scmp.eq.s32.totalorder %s23, 0
      %p76 = por %p74, %p75
      %s77 = ssub.s32 %s17, %s24
      %p78 = scmp.eq.s32.totalorder %s77, 0
      %s80 = sadd.s32 %s79, 1
      %s81 = scalar_select %p78, %s79, %s80
      %p84 = pneg %p78
      %p85 = scmp.eq.s32.totalorder %s17, 1
      %p86 = por %p84, %p85
      %p87 = scmp.ne.s32.totalorder %s79, %s82
      %p88 = scmp.eq.s32.totalorder %s17, 0
      %p89 = por %p87, %p88
      %p90 = scmp.ne.s32.totalorder %s79, %s82
      %p91 = scmp.eq.s32.totalorder %s22, 1
      %p92 = por %p90, %p91
      %p93 = scmp.ne.s32.totalorder %s82, %s83
      %p94 = scmp.eq.s32.totalorder %s22, 0
      %p95 = por %p93, %p94
      %p96 = scmp.ne.s32.totalorder %s82, %s83
      %p97 = scmp.eq.s32.totalorder %s23, 1
      %p98 = por %p96, %p97
      %p100 = scmp.ne.s32.totalorder %s83, %s99
      %p101 = scmp.eq.s32.totalorder %s23, 0
      %p102 = por %p100, %p101
      %s103 = ssub.s32 %s17, %s24
      %p104 = scmp.eq.s32.totalorder %s103, 0
      %s106 = sadd.s32 %s105, 1
      %s107 = scalar_select %p104, %s105, %s106
      %p110 = pneg %p104
      %p111 = scmp.eq.s32.totalorder %s17, 1
      %p112 = por %p110, %p111
      %p113 = scmp.ne.s32.totalorder %s105, %s108
      %p114 = scmp.eq.s32.totalorder %s17, 0
      %p115 = por %p113, %p114
      %p116 = scmp.ne.s32.totalorder %s105, %s108
      %p117 = scmp.eq.s32.totalorder %s22, 1
      %p118 = por %p116, %p117
      %p119 = scmp.ne.s32.totalorder %s108, %s109
      %p120 = scmp.eq.s32.totalorder %s22, 0
      %p121 = por %p119, %p120
      %p122 = scmp.ne.s32.totalorder %s108, %s109
      %p123 = scmp.eq.s32.totalorder %s23, 1
      %p124 = por %p122, %p123
      %p126 = scmp.ne.s32.totalorder %s109, %s125
      %p127 = scmp.eq.s32.totalorder %s23, 0
      %p128 = por %p126, %p127
      %s129 = ssub.s32 %s17, %s24
      %p130 = scmp.eq.s32.totalorder %s129, 0
      %s132 = sadd.s32 %s131, 1
      %s133 = scalar_select %p130, %s131, %s132
      %p136 = pneg %p130
      %p137 = scmp.eq.s32.totalorder %s17, 1
      %p138 = por %p136, %p137
      %p139 = scmp.ne.s32.totalorder %s131, %s134
      %p140 = scmp.eq.s32.totalorder %s17, 0
      %p141 = por %p139, %p140
      %p142 = scmp.ne.s32.totalorder %s131, %s134
      %p143 = scmp.eq.s32.totalorder %s22, 1
      %p144 = por %p142, %p143
      %p145 = scmp.ne.s32.totalorder %s134, %s135
      %p146 = scmp.eq.s32.totalorder %s22, 0
      %p147 = por %p145, %p146
      %p148 = scmp.ne.s32.totalorder %s134, %s135
      %p149 = scmp.eq.s32.totalorder %s23, 1
      %p150 = por %p148, %p149
      %p152 = scmp.ne.s32.totalorder %s135, %s151
      %p153 = scmp.eq.s32.totalorder %s23, 0
      %p154 = por %p152, %p153
      %p155 = scmp.le.s32.totalorder 1, %s17
      %p156 = scmp.lt.s32.totalorder %s17, 3
      %p157 = pnand %p155, %p156
      %p158 = pneg %p157
      // Predicated region
      $region9: #{cross_attention_selector.5} parent=5 // pred_check
        _
      $region10: #{cross_attention_selector.5} parent=5 // pred_check_branch
        %160 = sbr.rel (%p157) target = $region12
      $region11: #{cross_attention_selector.5} parent=5 // pred_region
        %s161 = ssub.s32 %s17, 1
      $region12: #{cross_attention_selector.5} parent=5 // pred_fallthru
        _
      %p162 = scmp.lt.s32.totalorder %s17, 2
      // Predicated region
      $region13: #{cross_attention_selector.5} parent=5 // pred_check
        %p163 = pneg %p162
      $region14: #{cross_attention_selector.5} parent=5 // pred_check_branch
        %165 = sbr.rel (%p163) target = $region16
      $region15: #{cross_attention_selector.5} parent=5 // pred_region
        // Predicated region
        $region17: #{cross_attention_selector.5} parent=15 // pred_check
          %p166 = pneg %p37
        $region18: #{cross_attention_selector.5} parent=15 // pred_check_branch
          %168 = sbr.rel (%p166) target = $region20
        $region19: #{cross_attention_selector.5} parent=15 // pred_region
          %p169 = scmp.lt.s32.totalorder %s17, 1
          %s170 = scalar_select %p169, %s17, 1
          %s171 = smul.addr %s170, 8
          %s172 = scalar_lea.vmem %s0, %s171
        $region20: #{cross_attention_selector.5} parent=15 // pred_fallthru
          _
        // Predicated region
        $region21: #{cross_attention_selector.5} parent=15 // pred_check
          %p173 = pneg %p63
        $region22: #{cross_attention_selector.5} parent=15 // pred_check_branch
          %175 = sbr.rel (%p173) target = $region24
        $region23: #{cross_attention_selector.5} parent=15 // pred_region
          %p176 = scmp.lt.s32.totalorder %s17, 1
          %s177 = scalar_select %p176, %s17, 1
          %s178 = smul.addr %s177, 8
          %s179 = scalar_lea.vmem %s1, %s178
        $region24: #{cross_attention_selector.5} parent=15 // pred_fallthru
          _
        // Predicated region
        $region25: #{cross_attention_selector.5} parent=15 // pred_check
          %p180 = pneg %p89
        $region26: #{cross_attention_selector.5} parent=15 // pred_check_branch
          %182 = sbr.rel (%p180) target = $region28
        $region27: #{cross_attention_selector.5} parent=15 // pred_region
          %p183 = scmp.lt.s32.totalorder %s17, 1
          %s184 = scalar_select %p183, %s17, 1
          %s185 = scalar_lea.vmem %s2, %s184
        $region28: #{cross_attention_selector.5} parent=15 // pred_fallthru
          _
      $region16: #{cross_attention_selector.5} parent=5 // pred_fallthru
        _
      %p186 = scmp.le.s32.totalorder 1, %s17
      %p187 = scmp.lt.s32.totalorder %s17, 3
      %p188 = pnand %p186, %p187
      %p189 = pneg %p188
      // Predicated region
      $region29: #{cross_attention_selector.5} parent=5 // pred_check
        _
      $region30: #{cross_attention_selector.5} parent=5 // pred_check_branch
        %191 = sbr.rel (%p188) target = $region32
      $region31: #{cross_attention_selector.5} parent=5 // pred_region
        %s192 = ssub.s32 %s17, 1
        %p193 = scmp.lt.s32.totalorder %s22, 1
        %s194 = scalar_select %p193, %s22, 1
        %s195 = smul.addr %s194, 8
        %s196 = scalar_lea.vmem %s0, %s195
        %p197 = pneg %p43
        %p198 = pneg %p40
        %p199 = scmp.lt.s32.totalorder %s22, 1
        %s200 = scalar_select %p199, %s22, 1
        %s201 = smul.addr %s200, 8
        %s202 = scalar_lea.vmem %s1, %s201
        %p203 = pneg %p69
        %p204 = pneg %p66
        %p205 = scmp.lt.s32.totalorder %s22, 1
        %s206 = scalar_select %p205, %s22, 1
        %s207 = scalar_lea.vmem %s2, %s206
        %p208 = pneg %p95
        %p209 = pneg %p92
        %p210 = pneg %p121
        %p211 = pneg %p118
        %s212 = sand.u32 %s108, 1
        %s213 = scalar_lea.sflag [#allocation3], %s212
        %s214 = sand.u32 %s108, 1
        %s215 = smul.addr %s214, 32
        %s216 = scalar_lea.vmem [#allocation2], %s215
        %p217 = pneg %p147
        %p218 = pneg %p144
        %s219 = sand.u32 %s134, 1
        %s220 = scalar_lea.sflag [#allocation5], %s219
        %s221 = sand.u32 %s134, 1
        %s222 = smul.addr %s221, 8
        %s223 = scalar_lea.vmem [#allocation4], %s222
        %p224 = scmp.lt.s32.totalorder %s22, 1
        %s225 = scalar_select %p224, %s22, 1
        %s226 = smul.addr %s225, 8
        %s227 = scalar_lea.vmem %s0, %s226
        %p228 = scmp.lt.s32.totalorder %s22, 1
        %s229 = scalar_select %p228, %s22, 1
        %s230 = smul.addr %s229, 8
        %s231 = scalar_lea.vmem %s1, %s230
        %p232 = scmp.lt.s32.totalorder %s22, 1
        %s233 = scalar_select %p232, %s22, 1
        %s234 = scalar_lea.vmem %s2, %s233
        %v235 = vld [vmem:[%s234] sm:$0x1]
        %v236 = vld [vmem:[%s227] sm:$0xff]
        %v237 = vld [vmem:[%s231] sm:$0xff]
        %vm238 = vcmask 64512
        %v240 = vsel %vm238, %v236, 0
        %v243 = vsel %vm238, %v237, 0
        %245 = vmatprep.subr.mxu0 0.0
        %246 = vmatpush1.xpose.msra.mxu0 0.0
        %247 = vmatprep.subr.mxu0 0.0
        %248 = vmatpush1.xpose.msra.mxu0 0.0
        %249 = vmatprep.subr.mxu0 0.0
        %250 = vmatpush1.xpose.msra.mxu0 0.0
        %251 = vmatprep.subr.mxu0 0.0
        %252 = vmatpush1.xpose.msra.mxu0 0.0
        %253 = vmatprep.subr.mxu0 0.0
        %254 = vmatpush1.xpose.msra.mxu0 0.0
        %255 = vmatprep.subr.mxu0 0.0
        %256 = vmatpush1.xpose.msra.mxu0 0.0
        %257 = vmatprep.subr.mxu0 0.0
        %258 = vmatpush1.xpose.msra.mxu0 0.0
        %259 = vmatprep.subr.mxu0 0.0
        %260 = vmatpush1.xpose.msra.mxu0 0.0
        %261 = vmatprep.subr.mxu0 0.0
        %262 = vmatpush1.xpose.msra.mxu0 0.0
        %263 = vmatprep.subr.mxu0 0.0
        %264 = vmatpush1.xpose.msra.mxu0 0.0
        %265 = vmatprep.subr.mxu0 0.0
        %266 = vmatpush1.xpose.msra.mxu0 0.0
        %267 = vmatprep.subr.mxu0 0.0
        %268 = vmatpush1.xpose.msra.mxu0 0.0
        %269 = vmatprep.subr.mxu0 0.0
        %270 = vmatpush1.xpose.msra.mxu0 0.0
        %271 = vmatprep.subr.mxu0 0.0
        %272 = vmatpush1.xpose.msra.mxu0 0.0
        %273 = vmatprep.subr.mxu0 0.0
        %274 = vmatpush1.xpose.msra.mxu0 0.0
        %275 = vmatprep.subr.mxu0 0.0
        %276 = vmatpush1.xpose.msra.mxu0 %v243
        %277 = vmatprep.subr.mxu0 0.0
        %278 = vmatpush2.xpose.msra.mxu0 0.0
        %279 = vmatprep.subr.mxu0 0.0
        %280 = vmatpush2.xpose.msra.mxu0 0.0
        %281 = vmatprep.subr.mxu0 0.0
        %282 = vmatpush2.xpose.msra.mxu0 0.0
        %283 = vmatprep.subr.mxu0 0.0
        %284 = vmatpush2.xpose.msra.mxu0 0.0
        %285 = vmatprep.subr.mxu0 0.0
        %286 = vmatpush2.xpose.msra.mxu0 0.0
        %287 = vmatprep.subr.mxu0 0.0
        %288 = vmatpush2.xpose.msra.mxu0 0.0
        %289 = vmatprep.subr.mxu0 0.0
        %290 = vmatpush2.xpose.msra.mxu0 0.0
        %291 = vmatprep.subr.mxu0 0.0
        %292 = vmatpush2.xpose.msra.mxu0 0.0
        %293 = vmatprep.subr.mxu0 0.0
        %294 = vmatpush2.xpose.msra.mxu0 0.0
        %295 = vmatprep.subr.mxu0 0.0
        %296 = vmatpush2.xpose.msra.mxu0 0.0
        %297 = vmatprep.subr.mxu0 0.0
        %298 = vmatpush2.xpose.msra.mxu0 0.0
        %299 = vmatprep.subr.mxu0 0.0
        %300 = vmatpush2.xpose.msra.mxu0 0.0
        %301 = vmatprep.subr.mxu0 0.0
        %302 = vmatpush2.xpose.msra.mxu0 0.0
        %303 = vmatprep.subr.mxu0 0.0
        %304 = vmatpush2.xpose.msra.mxu0 0.0
        %305 = vmatprep.subr.mxu0 0.0
        %306 = vmatpush2.xpose.msra.mxu0 0.0
        %307 = vmatprep.subr.mxu0 0.0
        %308 = vmatpush2.xpose.msra.mxu0 0.0
        %309 = vmatprep.mubr.f32.mxu0 0.0
        %310 = vmatmul.mubr.f32.gmra.mxu0 %v240
        %v311 = vpop.f32.mrf.mxu0
        %v312 = vadd.f32 0.0, %v311
        %v313 = vpop.f32.mrf.mxu0
        %314 = vdwg.mxu0
        %v315 = vmul.f32 %v312, 0.35355338
        %vm316 = vcmp.eq.f32.partialorder %v235, 0.0
        %v317 = vsel %vm316, 1, 0
        %v318 = vlaneseq
        %v319 = vshrl.u32 %v318, 7
        %v320 = vsub.s32 0, %v319
        %v321 = vrot.slane %v317, %v320
        %vm322 = vcmp.eq.s32.totalorder %v321, 1
        %v323 = vsel %vm322, -inf, %v315
        %324 = vst.msk [vmem:[%s216] sm:$0xff] %vm238, %v323
        %v325 = vsel %vm238, %v323, -inf
        %326 = vmax.xlane.f32.xlu0 %v325
        %v327 = vpop.xlane.xlu0 %326
        %v328 = vsub.f32 %v323, %v327
        %v329 = vmul.f32 %v328, 1.442695
        %v330 = vpow.pop %v329
        %v331 = vsel %vm238, %v330, 0.0
        %332 = vadd.xlane.f32.xlu0 %v331
        %v333 = vpop.xlane.xlu0 %332
        %v334 = vrcp.pop %v333
        %v335 = vmul.f32 %v330, %v334
        %336 = vrot.lane.b32.xlu0 %v237, 96
        %v337 = vpop.permute.xlu0 %336
        %v340 = vsel %vm238, %v335, 0
        %342 = vmatprep.subr.mxu0 0.0
        %343 = vmatpush1.msra.mxu0 0.0
        %344 = vmatprep.subr.mxu0 0.0
        %345 = vmatpush1.msra.mxu0 0.0
        %346 = vmatprep.subr.mxu0 0.0
        %347 = vmatpush1.msra.mxu0 0.0
        %348 = vmatprep.subr.mxu0 0.0
        %349 = vmatpush1.msra.mxu0 0.0
        %350 = vmatprep.subr.mxu0 0.0
        %351 = vmatpush1.msra.mxu0 0.0
        %352 = vmatprep.subr.mxu0 0.0
        %353 = vmatpush1.msra.mxu0 0.0
        %354 = vmatprep.subr.mxu0 0.0
        %355 = vmatpush1.msra.mxu0 0.0
        %356 = vmatprep.subr.mxu0 0.0
        %357 = vmatpush1.msra.mxu0 0.0
        %358 = vmatprep.subr.mxu0 0.0
        %359 = vmatpush1.msra.mxu0 0.0
        %360 = vmatprep.subr.mxu0 0.0
        %361 = vmatpush1.msra.mxu0 0.0
        %362 = vmatprep.subr.mxu0 0.0
        %363 = vmatpush1.msra.mxu0 0.0
        %364 = vmatprep.subr.mxu0 0.0
        %365 = vmatpush1.msra.mxu0 0.0
        %366 = vmatprep.subr.mxu0 0.0
        %367 = vmatpush1.msra.mxu0 0.0
        %368 = vmatprep.subr.mxu0 0.0
        %369 = vmatpush1.msra.mxu0 0.0
        %370 = vmatprep.subr.mxu0 0.0
        %371 = vmatpush1.msra.mxu0 0.0
        %372 = vmatprep.subr.mxu0 0.0
        %373 = vmatpush1.msra.mxu0 %v337
        %374 = vmatprep.subr.mxu0 0.0
        %375 = vmatpush2.msra.mxu0 0.0
        %376 = vmatprep.subr.mxu0 0.0
        %377 = vmatpush2.msra.mxu0 0.0
        %378 = vmatprep.subr.mxu0 0.0
        %379 = vmatpush2.msra.mxu0 0.0
        %380 = vmatprep.subr.mxu0 0.0
        %381 = vmatpush2.msra.mxu0 0.0
        %382 = vmatprep.subr.mxu0 0.0
        %383 = vmatpush2.msra.mxu0 0.0
        %384 = vmatprep.subr.mxu0 0.0
        %385 = vmatpush2.msra.mxu0 0.0
        %386 = vmatprep.subr.mxu0 0.0
        %387 = vmatpush2.msra.mxu0 0.0
        %388 = vmatprep.subr.mxu0 0.0
        %389 = vmatpush2.msra.mxu0 0.0
        %390 = vmatprep.subr.mxu0 0.0
        %391 = vmatpush2.msra.mxu0 0.0
        %392 = vmatprep.subr.mxu0 0.0
        %393 = vmatpush2.msra.mxu0 0.0
        %394 = vmatprep.subr.mxu0 0.0
        %395 = vmatpush2.msra.mxu0 0.0
        %396 = vmatprep.subr.mxu0 0.0
        %397 = vmatpush2.msra.mxu0 0.0
        %398 = vmatprep.subr.mxu0 0.0
        %399 = vmatpush2.msra.mxu0 0.0
        %400 = vmatprep.subr.mxu0 0.0
        %401 = vmatpush2.msra.mxu0 0.0
        %402 = vmatprep.subr.mxu0 0.0
        %403 = vmatpush2.msra.mxu0 0.0
        %404 = vmatprep.subr.mxu0 0.0
        %405 = vmatpush2.msra.mxu0 0.0
        %406 = vmatprep.mubr.f32.mxu0 0.0
        %407 = vmatmul.mubr.f32.gmra.mxu0 %v340
        %v408 = vpop.f32.mrf.mxu0
        %v409 = vadd.f32 0.0, %v408
        %v410 = vpop.f32.mrf.mxu0
        %411 = vdwg.mxu0
        %412 = vst.msk [vmem:[%s223] sm:$0xff] %vm238, %v409
        %v413 = vld [vmem:[%s227] sm:$0xff]
        %v414 = vld [vmem:[%s231] sm:$0xff]
        %416 = vrot.lane.b32.xlu0 %v413, 120
        %v417 = vpop.permute.xlu0 %416
        %419 = vrot.lane.b32.xlu0 %v414, 120
        %v420 = vpop.permute.xlu0 %419
        %v421 = vsel %vm238, %v417, 0
        %v423 = vsel %vm238, %v420, 0
        %425 = vmatprep.subr.mxu0 0.0
        %426 = vmatpush1.xpose.msra.mxu0 0.0
        %427 = vmatprep.subr.mxu0 0.0
        %428 = vmatpush1.xpose.msra.mxu0 0.0
        %429 = vmatprep.subr.mxu0 0.0
        %430 = vmatpush1.xpose.msra.mxu0 0.0
        %431 = vmatprep.subr.mxu0 0.0
        %432 = vmatpush1.xpose.msra.mxu0 0.0
        %433 = vmatprep.subr.mxu0 0.0
        %434 = vmatpush1.xpose.msra.mxu0 0.0
        %435 = vmatprep.subr.mxu0 0.0
        %436 = vmatpush1.xpose.msra.mxu0 0.0
        %437 = vmatprep.subr.mxu0 0.0
        %438 = vmatpush1.xpose.msra.mxu0 0.0
        %439 = vmatprep.subr.mxu0 0.0
        %440 = vmatpush1.xpose.msra.mxu0 0.0
        %441 = vmatprep.subr.mxu0 0.0
        %442 = vmatpush1.xpose.msra.mxu0 0.0
        %443 = vmatprep.subr.mxu0 0.0
        %444 = vmatpush1.xpose.msra.mxu0 0.0
        %445 = vmatprep.subr.mxu0 0.0
        %446 = vmatpush1.xpose.msra.mxu0 0.0
        %447 = vmatprep.subr.mxu0 0.0
        %448 = vmatpush1.xpose.msra.mxu0 0.0
        %449 = vmatprep.subr.mxu0 0.0
        %450 = vmatpush1.xpose.msra.mxu0 0.0
        %451 = vmatprep.subr.mxu0 0.0
        %452 = vmatpush1.xpose.msra.mxu0 0.0
        %453 = vmatprep.subr.mxu0 0.0
        %454 = vmatpush1.xpose.msra.mxu0 0.0
        %455 = vmatprep.subr.mxu0 0.0
        %456 = vmatpush1.xpose.msra.mxu0 %v423
        %457 = vmatprep.subr.mxu0 0.0
        %458 = vmatpush2.xpose.msra.mxu0 0.0
        %459 = vmatprep.subr.mxu0 0.0
        %460 = vmatpush2.xpose.msra.mxu0 0.0
        %461 = vmatprep.subr.mxu0 0.0
        %462 = vmatpush2.xpose.msra.mxu0 0.0
        %463 = vmatprep.subr.mxu0 0.0
        %464 = vmatpush2.xpose.msra.mxu0 0.0
        %465 = vmatprep.subr.mxu0 0.0
        %466 = vmatpush2.xpose.msra.mxu0 0.0
        %467 = vmatprep.subr.mxu0 0.0
        %468 = vmatpush2.xpose.msra.mxu0 0.0
        %469 = vmatprep.subr.mxu0 0.0
        %470 = vmatpush2.xpose.msra.mxu0 0.0
        %471 = vmatprep.subr.mxu0 0.0
        %472 = vmatpush2.xpose.msra.mxu0 0.0
        %473 = vmatprep.subr.mxu0 0.0
        %474 = vmatpush2.xpose.msra.mxu0 0.0
        %475 = vmatprep.subr.mxu0 0.0
        %476 = vmatpush2.xpose.msra.mxu0 0.0
        %477 = vmatprep.subr.mxu0 0.0
        %478 = vmatpush2.xpose.msra.mxu0 0.0
        %479 = vmatprep.subr.mxu0 0.0
        %480 = vmatpush2.xpose.msra.mxu0 0.0
        %481 = vmatprep.subr.mxu0 0.0
        %482 = vmatpush2.xpose.msra.mxu0 0.0
        %483 = vmatprep.subr.mxu0 0.0
        %484 = vmatpush2.xpose.msra.mxu0 0.0
        %485 = vmatprep.subr.mxu0 0.0
        %486 = vmatpush2.xpose.msra.mxu0 0.0
        %487 = vmatprep.subr.mxu0 0.0
        %488 = vmatpush2.xpose.msra.mxu0 0.0
        %489 = vmatprep.mubr.f32.mxu0 0.0
        %490 = vmatmul.mubr.f32.gmra.mxu0 %v421
        %v491 = vpop.f32.mrf.mxu0
        %v492 = vadd.f32 0.0, %v491
        %v493 = vpop.f32.mrf.mxu0
        %494 = vdwg.mxu0
        %v495 = vmul.f32 %v492, 0.35355338
        %v496 = vsel %vm322, -inf, %v495
        %s497 = scalar_lea.vmem %s216, 8 [#allocation2]
        %498 = vst.msk [vmem:[%s497] sm:$0xff] %vm238, %v496
        %v499 = vsel %vm238, %v496, -inf
        %500 = vmax.xlane.f32.xlu0 %v499
        %v501 = vpop.xlane.xlu0 %500
        %v502 = vsub.f32 %v496, %v501
        %v503 = vmul.f32 %v502, 1.442695
        %v504 = vpow.pop %v503
        %v505 = vsel %vm238, %v504, 0.0
        %506 = vadd.xlane.f32.xlu0 %v505
        %v507 = vpop.xlane.xlu0 %506
        %v508 = vrcp.pop %v507
        %v509 = vmul.f32 %v504, %v508
        %510 = vrot.lane.b32.xlu0 %v414, 88
        %v511 = vpop.permute.xlu0 %510
        %v514 = vsel %vm238, %v509, 0
        %516 = vmatprep.subr.mxu0 0.0
        %517 = vmatpush1.msra.mxu0 0.0
        %518 = vmatprep.subr.mxu0 0.0
        %519 = vmatpush1.msra.mxu0 0.0
        %520 = vmatprep.subr.mxu0 0.0
        %521 = vmatpush1.msra.mxu0 0.0
        %522 = vmatprep.subr.mxu0 0.0
        %523 = vmatpush1.msra.mxu0 0.0
        %524 = vmatprep.subr.mxu0 0.0
        %525 = vmatpush1.msra.mxu0 0.0
        %526 = vmatprep.subr.mxu0 0.0
        %527 = vmatpush1.msra.mxu0 0.0
        %528 = vmatprep.subr.mxu0 0.0
        %529 = vmatpush1.msra.mxu0 0.0
        %530 = vmatprep.subr.mxu0 0.0
        %531 = vmatpush1.msra.mxu0 0.0
        %532 = vmatprep.subr.mxu0 0.0
        %533 = vmatpush1.msra.mxu0 0.0
        %534 = vmatprep.subr.mxu0 0.0
        %535 = vmatpush1.msra.mxu0 0.0
        %536 = vmatprep.subr.mxu0 0.0
        %537 = vmatpush1.msra.mxu0 0.0
        %538 = vmatprep.subr.mxu0 0.0
        %539 = vmatpush1.msra.mxu0 0.0
        %540 = vmatprep.subr.mxu0 0.0
        %541 = vmatpush1.msra.mxu0 0.0
        %542 = vmatprep.subr.mxu0 0.0
        %543 = vmatpush1.msra.mxu0 0.0
        %544 = vmatprep.subr.mxu0 0.0
        %545 = vmatpush1.msra.mxu0 0.0
        %546 = vmatprep.subr.mxu0 0.0
        %547 = vmatpush1.msra.mxu0 %v511
        %548 = vmatprep.subr.mxu0 0.0
        %549 = vmatpush2.msra.mxu0 0.0
        %550 = vmatprep.subr.mxu0 0.0
        %551 = vmatpush2.msra.mxu0 0.0
        %552 = vmatprep.subr.mxu0 0.0
        %553 = vmatpush2.msra.mxu0 0.0
        %554 = vmatprep.subr.mxu0 0.0
        %555 = vmatpush2.msra.mxu0 0.0
        %556 = vmatprep.subr.mxu0 0.0
        %557 = vmatpush2.msra.mxu0 0.0
        %558 = vmatprep.subr.mxu0 0.0
        %559 = vmatpush2.msra.mxu0 0.0
        %560 = vmatprep.subr.mxu0 0.0
        %561 = vmatpush2.msra.mxu0 0.0
        %562 = vmatprep.subr.mxu0 0.0
        %563 = vmatpush2.msra.mxu0 0.0
        %564 = vmatprep.subr.mxu0 0.0
        %565 = vmatpush2.msra.mxu0 0.0
        %566 = vmatprep.subr.mxu0 0.0
        %567 = vmatpush2.msra.mxu0 0.0
        %568 = vmatprep.subr.mxu0 0.0
        %569 = vmatpush2.msra.mxu0 0.0
        %570 = vmatprep.subr.mxu0 0.0
        %571 = vmatpush2.msra.mxu0 0.0
        %572 = vmatprep.subr.mxu0 0.0
        %573 = vmatpush2.msra.mxu0 0.0
        %574 = vmatprep.subr.mxu0 0.0
        %575 = vmatpush2.msra.mxu0 0.0
        %576 = vmatprep.subr.mxu0 0.0
        %577 = vmatpush2.msra.mxu0 0.0
        %578 = vmatprep.subr.mxu0 0.0
        %579 = vmatpush2.msra.mxu0 0.0
        %580 = vmatprep.mubr.f32.mxu0 0.0
        %581 = vmatmul.mubr.f32.gmra.mxu0 %v514
        %v582 = vpop.f32.mrf.mxu0
        %v583 = vadd.f32 0.0, %v582
        %v584 = vpop.f32.mrf.mxu0
        %585 = vdwg.mxu0
        %587 = vrot.lane.b32.xlu0 %v583, 8
        %v588 = vpop.permute.xlu0 %587
        %vm590 = vcmask 130112
        %591 = vst.msk [vmem:[%s223] sm:$0xff] %vm590, %v588
        %v592 = vld [vmem:[%s227] sm:$0xff]
        %v593 = vld [vmem:[%s231] sm:$0xff]
        %595 = vrot.lane.b32.xlu0 %v592, 112
        %v596 = vpop.permute.xlu0 %595
        %598 = vrot.lane.b32.xlu0 %v593, 112
        %v599 = vpop.permute.xlu0 %598
        %v600 = vsel %vm238, %v596, 0
        %v602 = vsel %vm238, %v599, 0
        %604 = vmatprep.subr.mxu0 0.0
        %605 = vmatpush1.xpose.msra.mxu0 0.0
        %606 = vmatprep.subr.mxu0 0.0
        %607 = vmatpush1.xpose.msra.mxu0 0.0
        %608 = vmatprep.subr.mxu0 0.0
        %609 = vmatpush1.xpose.msra.mxu0 0.0
        %610 = vmatprep.subr.mxu0 0.0
        %611 = vmatpush1.xpose.msra.mxu0 0.0
        %612 = vmatprep.subr.mxu0 0.0
        %613 = vmatpush1.xpose.msra.mxu0 0.0
        %614 = vmatprep.subr.mxu0 0.0
        %615 = vmatpush1.xpose.msra.mxu0 0.0
        %616 = vmatprep.subr.mxu0 0.0
        %617 = vmatpush1.xpose.msra.mxu0 0.0
        %618 = vmatprep.subr.mxu0 0.0
        %619 = vmatpush1.xpose.msra.mxu0 0.0
        %620 = vmatprep.subr.mxu0 0.0
        %621 = vmatpush1.xpose.msra.mxu0 0.0
        %622 = vmatprep.subr.mxu0 0.0
        %623 = vmatpush1.xpose.msra.mxu0 0.0
        %624 = vmatprep.subr.mxu0 0.0
        %625 = vmatpush1.xpose.msra.mxu0 0.0
        %626 = vmatprep.subr.mxu0 0.0
        %627 = vmatpush1.xpose.msra.mxu0 0.0
        %628 = vmatprep.subr.mxu0 0.0
        %629 = vmatpush1.xpose.msra.mxu0 0.0
        %630 = vmatprep.subr.mxu0 0.0
        %631 = vmatpush1.xpose.msra.mxu0 0.0
        %632 = vmatprep.subr.mxu0 0.0
        %633 = vmatpush1.xpose.msra.mxu0 0.0
        %634 = vmatprep.subr.mxu0 0.0
        %635 = vmatpush1.xpose.msra.mxu0 %v602
        %636 = vmatprep.subr.mxu0 0.0
        %637 = vmatpush2.xpose.msra.mxu0 0.0
        %638 = vmatprep.subr.mxu0 0.0
        %639 = vmatpush2.xpose.msra.mxu0 0.0
        %640 = vmatprep.subr.mxu0 0.0
        %641 = vmatpush2.xpose.msra.mxu0 0.0
        %642 = vmatprep.subr.mxu0 0.0
        %643 = vmatpush2.xpose.msra.mxu0 0.0
        %644 = vmatprep.subr.mxu0 0.0
        %645 = vmatpush2.xpose.msra.mxu0 0.0
        %646 = vmatprep.subr.mxu0 0.0
        %647 = vmatpush2.xpose.msra.mxu0 0.0
        %648 = vmatprep.subr.mxu0 0.0
        %649 = vmatpush2.xpose.msra.mxu0 0.0
        %650 = vmatprep.subr.mxu0 0.0
        %651 = vmatpush2.xpose.msra.mxu0 0.0
        %652 = vmatprep.subr.mxu0 0.0
        %653 = vmatpush2.xpose.msra.mxu0 0.0
        %654 = vmatprep.subr.mxu0 0.0
        %655 = vmatpush2.xpose.msra.mxu0 0.0
        %656 = vmatprep.subr.mxu0 0.0
        %657 = vmatpush2.xpose.msra.mxu0 0.0
        %658 = vmatprep.subr.mxu0 0.0
        %659 = vmatpush2.xpose.msra.mxu0 0.0
        %660 = vmatprep.subr.mxu0 0.0
        %661 = vmatpush2.xpose.msra.mxu0 0.0
        %662 = vmatprep.subr.mxu0 0.0
        %663 = vmatpush2.xpose.msra.mxu0 0.0
        %664 = vmatprep.subr.mxu0 0.0
        %665 = vmatpush2.xpose.msra.mxu0 0.0
        %666 = vmatprep.subr.mxu0 0.0
        %667 = vmatpush2.xpose.msra.mxu0 0.0
        %668 = vmatprep.mubr.f32.mxu0 0.0
        %669 = vmatmul.mubr.f32.gmra.mxu0 %v600
        %v670 = vpop.f32.mrf.mxu0
        %v671 = vadd.f32 0.0, %v670
        %v672 = vpop.f32.mrf.mxu0
        %673 = vdwg.mxu0
        %v674 = vmul.f32 %v671, 0.35355338
        %v675 = vsel %vm322, -inf, %v674
        %s676 = scalar_lea.vmem %s216, 16 [#allocation2]
        %677 = vst.msk [vmem:[%s676] sm:$0xff] %vm238, %v675
        %v678 = vsel %vm238, %v675, -inf
        %679 = vmax.xlane.f32.xlu0 %v678
        %v680 = vpop.xlane.xlu0 %679
        %v681 = vsub.f32 %v675, %v680
        %v682 = vmul.f32 %v681, 1.442695
        %v683 = vpow.pop %v682
        %v684 = vsel %vm238, %v683, 0.0
        %685 = vadd.xlane.f32.xlu0 %v684
        %v686 = vpop.xlane.xlu0 %685
        %v687 = vrcp.pop %v686
        %v688 = vmul.f32 %v683, %v687
        %689 = vrot.lane.b32.xlu0 %v593, 80
        %v690 = vpop.permute.xlu0 %689
        %v693 = vsel %vm238, %v688, 0
        %695 = vmatprep.subr.mxu0 0.0
        %696 = vmatpush1.msra.mxu0 0.0
        %697 = vmatprep.subr.mxu0 0.0
        %698 = vmatpush1.msra.mxu0 0.0
        %699 = vmatprep.subr.mxu0 0.0
        %700 = vmatpush1.msra.mxu0 0.0
        %701 = vmatprep.subr.mxu0 0.0
        %702 = vmatpush1.msra.mxu0 0.0
        %703 = vmatprep.subr.mxu0 0.0
        %704 = vmatpush1.msra.mxu0 0.0
        %705 = vmatprep.subr.mxu0 0.0
        %706 = vmatpush1.msra.mxu0 0.0
        %707 = vmatprep.subr.mxu0 0.0
        %708 = vmatpush1.msra.mxu0 0.0
        %709 = vmatprep.subr.mxu0 0.0
        %710 = vmatpush1.msra.mxu0 0.0
        %711 = vmatprep.subr.mxu0 0.0
        %712 = vmatpush1.msra.mxu0 0.0
        %713 = vmatprep.subr.mxu0 0.0
        %714 = vmatpush1.msra.mxu0 0.0
        %715 = vmatprep.subr.mxu0 0.0
        %716 = vmatpush1.msra.mxu0 0.0
        %717 = vmatprep.subr.mxu0 0.0
        %718 = vmatpush1.msra.mxu0 0.0
        %719 = vmatprep.subr.mxu0 0.0
        %720 = vmatpush1.msra.mxu0 0.0
        %721 = vmatprep.subr.mxu0 0.0
        %722 = vmatpush1.msra.mxu0 0.0
        %723 = vmatprep.subr.mxu0 0.0
        %724 = vmatpush1.msra.mxu0 0.0
        %725 = vmatprep.subr.mxu0 0.0
        %726 = vmatpush1.msra.mxu0 %v690
        %727 = vmatprep.subr.mxu0 0.0
        %728 = vmatpush2.msra.mxu0 0.0
        %729 = vmatprep.subr.mxu0 0.0
        %730 = vmatpush2.msra.mxu0 0.0
        %731 = vmatprep.subr.mxu0 0.0
        %732 = vmatpush2.msra.mxu0 0.0
        %733 = vmatprep.subr.mxu0 0.0
        %734 = vmatpush2.msra.mxu0 0.0
        %735 = vmatprep.subr.mxu0 0.0
        %736 = vmatpush2.msra.mxu0 0.0
        %737 = vmatprep.subr.mxu0 0.0
        %738 = vmatpush2.msra.mxu0 0.0
        %739 = vmatprep.subr.mxu0 0.0
        %740 = vmatpush2.msra.mxu0 0.0
        %741 = vmatprep.subr.mxu0 0.0
        %742 = vmatpush2.msra.mxu0 0.0
        %743 = vmatprep.subr.mxu0 0.0
        %744 = vmatpush2.msra.mxu0 0.0
        %745 = vmatprep.subr.mxu0 0.0
        %746 = vmatpush2.msra.mxu0 0.0
        %747 = vmatprep.subr.mxu0 0.0
        %748 = vmatpush2.msra.mxu0 0.0
        %749 = vmatprep.subr.mxu0 0.0
        %750 = vmatpush2.msra.mxu0 0.0
        %751 = vmatprep.subr.mxu0 0.0
        %752 = vmatpush2.msra.mxu0 0.0
        %753 = vmatprep.subr.mxu0 0.0
        %754 = vmatpush2.msra.mxu0 0.0
        %755 = vmatprep.subr.mxu0 0.0
        %756 = vmatpush2.msra.mxu0 0.0
        %757 = vmatprep.subr.mxu0 0.0
        %758 = vmatpush2.msra.mxu0 0.0
        %759 = vmatprep.mubr.f32.mxu0 0.0
        %760 = vmatmul.mubr.f32.gmra.mxu0 %v693
        %v761 = vpop.f32.mrf.mxu0
        %v762 = vadd.f32 0.0, %v761
        %v763 = vpop.f32.mrf.mxu0
        %764 = vdwg.mxu0
        %766 = vrot.lane.b32.xlu0 %v762, 16
        %v767 = vpop.permute.xlu0 %766
        %vm769 = vcmask 195712
        %770 = vst.msk [vmem:[%s223] sm:$0xff] %vm769, %v767
        %v771 = vld [vmem:[%s227] sm:$0xff]
        %v772 = vld [vmem:[%s231] sm:$0xff]
        %774 = vrot.lane.b32.xlu0 %v771, 104
        %v775 = vpop.permute.xlu0 %774
        %777 = vrot.lane.b32.xlu0 %v772, 104
        %v778 = vpop.permute.xlu0 %777
        %v779 = vsel %vm238, %v775, 0
        %v781 = vsel %vm238, %v778, 0
        %783 = vmatprep.subr.mxu0 0.0
        %784 = vmatpush1.xpose.msra.mxu0 0.0
        %785 = vmatprep.subr.mxu0 0.0
        %786 = vmatpush1.xpose.msra.mxu0 0.0
        %787 = vmatprep.subr.mxu0 0.0
        %788 = vmatpush1.xpose.msra.mxu0 0.0
        %789 = vmatprep.subr.mxu0 0.0
        %790 = vmatpush1.xpose.msra.mxu0 0.0
        %791 = vmatprep.subr.mxu0 0.0
        %792 = vmatpush1.xpose.msra.mxu0 0.0
        %793 = vmatprep.subr.mxu0 0.0
        %794 = vmatpush1.xpose.msra.mxu0 0.0
        %795 = vmatprep.subr.mxu0 0.0
        %796 = vmatpush1.xpose.msra.mxu0 0.0
        %797 = vmatprep.subr.mxu0 0.0
        %798 = vmatpush1.xpose.msra.mxu0 0.0
        %799 = vmatprep.subr.mxu0 0.0
        %800 = vmatpush1.xpose.msra.mxu0 0.0
        %801 = vmatprep.subr.mxu0 0.0
        %802 = vmatpush1.xpose.msra.mxu0 0.0
        %803 = vmatprep.subr.mxu0 0.0
        %804 = vmatpush1.xpose.msra.mxu0 0.0
        %805 = vmatprep.subr.mxu0 0.0
        %806 = vmatpush1.xpose.msra.mxu0 0.0
        %807 = vmatprep.subr.mxu0 0.0
        %808 = vmatpush1.xpose.msra.mxu0 0.0
        %809 = vmatprep.subr.mxu0 0.0
        %810 = vmatpush1.xpose.msra.mxu0 0.0
        %811 = vmatprep.subr.mxu0 0.0
        %812 = vmatpush1.xpose.msra.mxu0 0.0
        %813 = vmatprep.subr.mxu0 0.0
        %814 = vmatpush1.xpose.msra.mxu0 %v781
        %815 = vmatprep.subr.mxu0 0.0
        %816 = vmatpush2.xpose.msra.mxu0 0.0
        %817 = vmatprep.subr.mxu0 0.0
        %818 = vmatpush2.xpose.msra.mxu0 0.0
        %819 = vmatprep.subr.mxu0 0.0
        %820 = vmatpush2.xpose.msra.mxu0 0.0
        %821 = vmatprep.subr.mxu0 0.0
        %822 = vmatpush2.xpose.msra.mxu0 0.0
        %823 = vmatprep.subr.mxu0 0.0
        %824 = vmatpush2.xpose.msra.mxu0 0.0
        %825 = vmatprep.subr.mxu0 0.0
        %826 = vmatpush2.xpose.msra.mxu0 0.0
        %827 = vmatprep.subr.mxu0 0.0
        %828 = vmatpush2.xpose.msra.mxu0 0.0
        %829 = vmatprep.subr.mxu0 0.0
        %830 = vmatpush2.xpose.msra.mxu0 0.0
        %831 = vmatprep.subr.mxu0 0.0
        %832 = vmatpush2.xpose.msra.mxu0 0.0
        %833 = vmatprep.subr.mxu0 0.0
        %834 = vmatpush2.xpose.msra.mxu0 0.0
        %835 = vmatprep.subr.mxu0 0.0
        %836 = vmatpush2.xpose.msra.mxu0 0.0
        %837 = vmatprep.subr.mxu0 0.0
        %838 = vmatpush2.xpose.msra.mxu0 0.0
        %839 = vmatprep.subr.mxu0 0.0
        %840 = vmatpush2.xpose.msra.mxu0 0.0
        %841 = vmatprep.subr.mxu0 0.0
        %842 = vmatpush2.xpose.msra.mxu0 0.0
        %843 = vmatprep.subr.mxu0 0.0
        %844 = vmatpush2.xpose.msra.mxu0 0.0
        %845 = vmatprep.subr.mxu0 0.0
        %846 = vmatpush2.xpose.msra.mxu0 0.0
        %847 = vmatprep.mubr.f32.mxu0 0.0
        %848 = vmatmul.mubr.f32.gmra.mxu0 %v779
        %v849 = vpop.f32.mrf.mxu0
        %v850 = vadd.f32 0.0, %v849
        %v851 = vpop.f32.mrf.mxu0
        %852 = vdwg.mxu0
        %v853 = vmul.f32 %v850, 0.35355338
        %v854 = vsel %vm322, -inf, %v853
        %s855 = scalar_lea.vmem %s216, 24 [#allocation2]
        %856 = vst.msk [vmem:[%s855] sm:$0xff] %vm238, %v854
        %v857 = vsel %vm238, %v854, -inf
        %858 = vmax.xlane.f32.xlu0 %v857
        %v859 = vpop.xlane.xlu0 %858
        %v860 = vsub.f32 %v854, %v859
        %v861 = vmul.f32 %v860, 1.442695
        %v862 = vpow.pop %v861
        %v863 = vsel %vm238, %v862, 0.0
        %864 = vadd.xlane.f32.xlu0 %v863
        %v865 = vpop.xlane.xlu0 %864
        %v866 = vrcp.pop %v865
        %v867 = vmul.f32 %v862, %v866
        %868 = vrot.lane.b32.xlu0 %v772, 72
        %v869 = vpop.permute.xlu0 %868
        %v872 = vsel %vm238, %v867, 0
        %874 = vmatprep.subr.mxu0 0.0
        %875 = vmatpush1.msra.mxu0 0.0
        %876 = vmatprep.subr.mxu0 0.0
        %877 = vmatpush1.msra.mxu0 0.0
        %878 = vmatprep.subr.mxu0 0.0
        %879 = vmatpush1.msra.mxu0 0.0
        %880 = vmatprep.subr.mxu0 0.0
        %881 = vmatpush1.msra.mxu0 0.0
        %882 = vmatprep.subr.mxu0 0.0
        %883 = vmatpush1.msra.mxu0 0.0
        %884 = vmatprep.subr.mxu0 0.0
        %885 = vmatpush1.msra.mxu0 0.0
        %886 = vmatprep.subr.mxu0 0.0
        %887 = vmatpush1.msra.mxu0 0.0
        %888 = vmatprep.subr.mxu0 0.0
        %889 = vmatpush1.msra.mxu0 0.0
        %890 = vmatprep.subr.mxu0 0.0
        %891 = vmatpush1.msra.mxu0 0.0
        %892 = vmatprep.subr.mxu0 0.0
        %893 = vmatpush1.msra.mxu0 0.0
        %894 = vmatprep.subr.mxu0 0.0
        %895 = vmatpush1.msra.mxu0 0.0
        %896 = vmatprep.subr.mxu0 0.0
        %897 = vmatpush1.msra.mxu0 0.0
        %898 = vmatprep.subr.mxu0 0.0
        %899 = vmatpush1.msra.mxu0 0.0
        %900 = vmatprep.subr.mxu0 0.0
        %901 = vmatpush1.msra.mxu0 0.0
        %902 = vmatprep.subr.mxu0 0.0
        %903 = vmatpush1.msra.mxu0 0.0
        %904 = vmatprep.subr.mxu0 0.0
        %905 = vmatpush1.msra.mxu0 %v869
        %906 = vmatprep.subr.mxu0 0.0
        %907 = vmatpush2.msra.mxu0 0.0
        %908 = vmatprep.subr.mxu0 0.0
        %909 = vmatpush2.msra.mxu0 0.0
        %910 = vmatprep.subr.mxu0 0.0
        %911 = vmatpush2.msra.mxu0 0.0
        %912 = vmatprep.subr.mxu0 0.0
        %913 = vmatpush2.msra.mxu0 0.0
        %914 = vmatprep.subr.mxu0 0.0
        %915 = vmatpush2.msra.mxu0 0.0
        %916 = vmatprep.subr.mxu0 0.0
        %917 = vmatpush2.msra.mxu0 0.0
        %918 = vmatprep.subr.mxu0 0.0
        %919 = vmatpush2.msra.mxu0 0.0
        %920 = vmatprep.subr.mxu0 0.0
        %921 = vmatpush2.msra.mxu0 0.0
        %922 = vmatprep.subr.mxu0 0.0
        %923 = vmatpush2.msra.mxu0 0.0
        %924 = vmatprep.subr.mxu0 0.0
        %925 = vmatpush2.msra.mxu0 0.0
        %926 = vmatprep.subr.mxu0 0.0
        %927 = vmatpush2.msra.mxu0 0.0
        %928 = vmatprep.subr.mxu0 0.0
        %929 = vmatpush2.msra.mxu0 0.0
        %930 = vmatprep.subr.mxu0 0.0
        %931 = vmatpush2.msra.mxu0 0.0
        %932 = vmatprep.subr.mxu0 0.0
        %933 = vmatpush2.msra.mxu0 0.0
        %934 = vmatprep.subr.mxu0 0.0
        %935 = vmatpush2.msra.mxu0 0.0
        %936 = vmatprep.subr.mxu0 0.0
        %937 = vmatpush2.msra.mxu0 0.0
        %938 = vmatprep.mubr.f32.mxu0 0.0
        %939 = vmatmul.mubr.f32.gmra.mxu0 %v872
        %v940 = vpop.f32.mrf.mxu0
        %v941 = vadd.f32 0.0, %v940
        %v942 = vpop.f32.mrf.mxu0
        %943 = vdwg.mxu0
        %945 = vrot.lane.b32.xlu0 %v941, 24
        %v946 = vpop.permute.xlu0 %945
        %vm948 = vcmask 261312
        %949 = vst.msk [vmem:[%s223] sm:$0xff] %vm948, %v946
        %s950 = sand.u32 %s108, 1
        %s951 = scalar_lea.sflag [#allocation3], %s950
        %s952 = sand.u32 %s108, 1
        %s953 = smul.addr %s952, 32
        %s954 = scalar_lea.vmem [#allocation2], %s953
        %s955 = sand.u32 %s134, 1
        %s956 = scalar_lea.sflag [#allocation5], %s955
        %s957 = sand.u32 %s134, 1
        %s958 = smul.addr %s957, 8
        %s959 = scalar_lea.vmem [#allocation4], %s958
        // Predicated region
        $region33: #{cross_attention_selector.5} parent=31 // pred_check
          %p960 = pneg %p118
        $region34: #{cross_attention_selector.5} parent=31 // pred_check_branch
          %962 = sbr.rel (%p960) target = $region36
        $region35: #{cross_attention_selector.5} parent=31 // pred_region
          %s964 = ssub.s32 512, 512
          %965 = vsyncadd %s951, %s964
          %s966 = smul.addr %s22, 4
          %s967 = smul.addr %s966, 128
          %s968 = scalar_lea.hbm %s3, %s967
          %s969 = sshll.u32 %s954, 4
          %s970 = int_to_ptr.vmem [resolvable:$true] %s969
          %975 = dma.vmem_to_hbm [thread:$0]  %s970, 512, %s968, %s951, 128, 128, 8
        $region36: #{cross_attention_selector.5} parent=31 // pred_fallthru
          _
        // Predicated region
        $region37: #{cross_attention_selector.5} parent=31 // pred_check
          %p976 = pneg %p144
        $region38: #{cross_attention_selector.5} parent=31 // pred_check_branch
          %978 = sbr.rel (%p976) target = $region40
        $region39: #{cross_attention_selector.5} parent=31 // pred_region
          %s980 = ssub.s32 128, 128
          %981 = vsyncadd %s956, %s980
          %s982 = smul.addr %s22, 128
          %s983 = scalar_lea.hbm %s4, %s982
          %s985 = sshll.u32 %s959, 4
          %s986 = int_to_ptr.vmem [resolvable:$true] %s985
          %988 = dma.vmem_to_hbm [thread:$0]  %s986, 128, %s983, %s956
        $region40: #{cross_attention_selector.5} parent=31 // pred_fallthru
          _
      $region32: #{cross_attention_selector.5} parent=5 // pred_fallthru
        _
      %p989 = scmp.le.s32.totalorder 2, %s17
      // Predicated region
      $region41: #{cross_attention_selector.5} parent=5 // pred_check
        %p990 = pneg %p989
      $region42: #{cross_attention_selector.5} parent=5 // pred_check_branch
        %992 = sbr.rel (%p990) target = $region44
      $region43: #{cross_attention_selector.5} parent=5 // pred_region
        %s993 = ssub.s32 %s17, 2
        // Predicated region
        $region45: #{cross_attention_selector.5} parent=43 // pred_check
          %p994 = pneg %p124
        $region46: #{cross_attention_selector.5} parent=43 // pred_check_branch
          %996 = sbr.rel (%p994) target = $region48
        $region47: #{cross_attention_selector.5} parent=43 // pred_region
          %s997 = sand.u32 %s109, 1
          %s998 = scalar_lea.sflag [#allocation3], %s997
          %s999 = sand.u32 %s109, 1
          %s1000 = smul.addr %s999, 32
          %s1001 = scalar_lea.vmem [#allocation2], %s1000
          %1002 = dma.done %s998, 512
        $region48: #{cross_attention_selector.5} parent=43 // pred_fallthru
          _
        // Predicated region
        $region49: #{cross_attention_selector.5} parent=43 // pred_check
          %p1003 = pneg %p150
        $region50: #{cross_attention_selector.5} parent=43 // pred_check_branch
          %1005 = sbr.rel (%p1003) target = $region52
        $region51: #{cross_attention_selector.5} parent=43 // pred_region
          %s1006 = sand.u32 %s135, 1
          %s1007 = scalar_lea.sflag [#allocation5], %s1006
          %s1008 = sand.u32 %s135, 1
          %s1009 = smul.addr %s1008, 8
          %s1010 = scalar_lea.vmem [#allocation4], %s1009
          %1011 = dma.done %s1007, 128
        $region52: #{cross_attention_selector.5} parent=43 // pred_fallthru
          _
      $region44: #{cross_attention_selector.5} parent=5 // pred_fallthru
        _
    $region6: #{cross_attention_selector.5} parent=1 // loop_footer
      %s21 = sadd.s32 1, %s17
    $region7: #{cross_attention_selector.5} parent=1 // loop_footer_branch
      %16 = sbr.rel target = $region3
    $region8: #{cross_attention_selector.5} parent=1 // loop_exit
      _
    %1012 = vsyncpa [#allocation3], 1
    %s1013 = scalar_lea.sflag [#allocation3], 1
    %1014 = vsyncpa %s1013, 1
    %1015 = vsyncpa [#allocation5], 1
    %s1016 = scalar_lea.sflag [#allocation5], 1
    %1017 = vsyncpa %s1016, 1

</llo_original>
